<compile_context>
chip_gen: v6e
topology: v6e:2x2x1
jax: 0.10.0
libtpu: 0.0.40
codegen_flags: <defaults>
</compile_context>

<pallas_src>
import functools

import jax
import jax.numpy as jnp
from jax.experimental import pallas as pl
from jax.experimental.pallas import tpu as pltpu


def _round_up(x, m):
    return ((x + m - 1) // m) * m


# ----------------------------------------------------------------------------
# Pallas kernels
# ----------------------------------------------------------------------------
def _embed_kernel(x_ref, w_ref, b_ref, o_ref):
    # embedding_h (+ eval-mode in_feat_dropout = identity)
    h = jnp.dot(x_ref[...], w_ref[...], preferred_element_type=jnp.float32)
    h = h + b_ref[...]
    o_ref[...] = h.astype(o_ref.dtype)


def _sage_layer_kernel(adj_ref, h_ref, pool_ref, wr_ref, wn_ref, shift_ref,
                       o_ref, pooled_ref, *, tm, residual):
    i = pl.program_id(0)

    # mean-neighbor aggregation for this row block on the MXU: (tm, N) @ (N, H)
    agg = jnp.dot(adj_ref[...], h_ref[...], preferred_element_type=jnp.float32)

    # root ("self") features: tile-aligned slice of the resident full h
    # (avoids a redundant per-block DMA of the same rows).
    row0 = pl.multiple_of(i * tm, tm)
    x_blk = h_ref[pl.ds(row0, tm), :]

    # root + neighbor matmuls (eval-BN scale pre-folded into both weights).
    h = jnp.dot(x_blk, wr_ref[...], preferred_element_type=jnp.float32)
    h = h + jnp.dot(agg.astype(wn_ref.dtype), wn_ref[...],
                    preferred_element_type=jnp.float32)
    h = h + shift_ref[...]            # fused bias + eval-BatchNorm shift
    h = jnp.maximum(h, 0.0)           # relu activation
    if residual:
        h = h + x_blk.astype(jnp.float32)
    h_lo = h.astype(o_ref.dtype)
    o_ref[...] = h_lo

    # fused graph readout: pooled += pool_block @ h_block, accumulated over row blocks
    @pl.when(i == 0)
    def _():
        pooled_ref[...] = jnp.zeros_like(pooled_ref)

    pooled_ref[...] += jnp.dot(pool_ref[...], h_lo,
                               preferred_element_type=jnp.float32)


def _mlp_head_kernel(f_ref, w1_ref, b1_ref, w2_ref, b2_ref, w3_ref, b3_ref, o_ref):
    # 3-layer MLPReadout fused into one kernel body; grid axis runs over heads.
    y = jnp.dot(f_ref[0], w1_ref[0], preferred_element_type=jnp.float32) + b1_ref[0]
    y = jnp.maximum(y, 0.0)
    y = jnp.dot(y.astype(w2_ref.dtype), w2_ref[0],
                preferred_element_type=jnp.float32) + b2_ref[0]
    y = jnp.maximum(y, 0.0)
    y = jnp.dot(y.astype(w3_ref.dtype), w3_ref[0],
                preferred_element_type=jnp.float32) + b3_ref[0]
    o_ref[0] = y


# ----------------------------------------------------------------------------
# pallas_call wrappers
# ----------------------------------------------------------------------------
def pallas_embed(x, w, b, tm):
    N_pad, IN_pad = x.shape
    H_pad = w.shape[1]
    return pl.pallas_call(
        _embed_kernel,
        out_shape=jax.ShapeDtypeStruct((N_pad, H_pad), jnp.bfloat16),
        grid=(N_pad // tm,),
        in_specs=[
            pl.BlockSpec((tm, IN_pad), lambda i: (i, 0)),
            pl.BlockSpec((IN_pad, H_pad), lambda i: (0, 0)),
            pl.BlockSpec((1, H_pad), lambda i: (0, 0)),
        ],
        out_specs=pl.BlockSpec((tm, H_pad), lambda i: (i, 0)),
        compiler_params=pltpu.CompilerParams(
            dimension_semantics=("parallel",)),
    )(x, w, b)


def pallas_sage_layer(adj, h, pool, w_root, w_neigh, shift, *, tm, residual):
    N_pad, H_pad = h.shape
    G_pad = pool.shape[0]
    kernel = functools.partial(_sage_layer_kernel, tm=tm, residual=residual)
    return pl.pallas_call(
        kernel,
        out_shape=(jax.ShapeDtypeStruct((N_pad, H_pad), jnp.bfloat16),
                   jax.ShapeDtypeStruct((G_pad, H_pad), jnp.float32)),
        grid=(N_pad // tm,),
        in_specs=[
            pl.BlockSpec((tm, N_pad), lambda i: (i, 0)),       # adj row block
            pl.BlockSpec((N_pad, H_pad), lambda i: (0, 0)),    # full h (resident, 1 DMA)
            pl.BlockSpec((G_pad, tm), lambda i: (0, i)),       # pool column block
            pl.BlockSpec((H_pad, H_pad), lambda i: (0, 0)),    # W_root (BN-folded)
            pl.BlockSpec((H_pad, H_pad), lambda i: (0, 0)),    # W_neigh (BN-folded)
            pl.BlockSpec((1, H_pad), lambda i: (0, 0)),        # fused bias + BN shift
        ],
        out_specs=(pl.BlockSpec((tm, H_pad), lambda i: (i, 0)),      # new node features
                   pl.BlockSpec((G_pad, H_pad), lambda i: (0, 0))),  # pooled readout (accumulator)
        compiler_params=pltpu.CompilerParams(
            # pooled output is an accumulator resident across row blocks -> "arbitrary".
            dimension_semantics=("arbitrary",)),
    )(adj, h, pool, w_root, w_neigh, shift)


def pallas_mlp_heads(feats, w1, b1, w2, b2, w3, b3):
    L, G_pad, H_pad = feats.shape
    D1 = w1.shape[2]
    D2 = w2.shape[2]
    C_pad = w3.shape[2]
    return pl.pallas_call(
        _mlp_head_kernel,
        out_shape=jax.ShapeDtypeStruct((L, G_pad, C_pad), jnp.float32),
        grid=(L,),
        in_specs=[
            pl.BlockSpec((1, G_pad, H_pad), lambda l: (l, 0, 0)),
            pl.BlockSpec((1, H_pad, D1), lambda l: (l, 0, 0)),
            pl.BlockSpec((1, 1, D1), lambda l: (l, 0, 0)),
            pl.BlockSpec((1, D1, D2), lambda l: (l, 0, 0)),
            pl.BlockSpec((1, 1, D2), lambda l: (l, 0, 0)),
            pl.BlockSpec((1, D2, C_pad), lambda l: (l, 0, 0)),
            pl.BlockSpec((1, 1, C_pad), lambda l: (l, 0, 0)),
        ],
        out_specs=pl.BlockSpec((1, G_pad, C_pad), lambda l: (l, 0, 0)),
        compiler_params=pltpu.CompilerParams(
            dimension_semantics=("parallel",)),
    )(feats, w1, b1, w2, b2, w3, b3)


# ----------------------------------------------------------------------------
# Parameters: raw init (PyTorch-style), then prep (pad / fold BN / cast bf16)
# ----------------------------------------------------------------------------
def init_params(key, in_dim, hidden_dim, out_dim, n_classes, n_layers, mlp_L=2):
    def dense(k, fan_in, fan_out):
        kw, kb = jax.random.split(k)
        lim = 1.0 / jnp.sqrt(fan_in)
        w = jax.random.uniform(kw, (fan_in, fan_out), jnp.float32, -lim, lim)
        b = jax.random.uniform(kb, (fan_out,), jnp.float32, -lim, lim)
        return w, b

    keys = jax.random.split(key, 1 + 2 * n_layers)
    params = {}
    params["emb_w"], params["emb_b"] = dense(keys[0], in_dim, hidden_dim)

    layers = []
    for l in range(n_layers):
        out = hidden_dim if l < n_layers - 1 else out_dim
        k1, k2 = jax.random.split(keys[1 + l])
        w_root, b = dense(k1, hidden_dim, out)
        w_neigh, _ = dense(k2, hidden_dim, out)
        # eval-mode BatchNorm: running_mean=0, running_var=1, gamma=1, beta=0, eps=1e-5
        eps = 1e-5
        gamma = jnp.ones((out,), jnp.float32)
        beta = jnp.zeros((out,), jnp.float32)
        run_mean = jnp.zeros((out,), jnp.float32)
        run_var = jnp.ones((out,), jnp.float32)
        scale = gamma / jnp.sqrt(run_var + eps)
        shift = beta - run_mean * scale
        layers.append(dict(w_root=w_root, w_neigh=w_neigh, b=b,
                           bn_scale=scale, bn_shift=shift))
    params["layers"] = layers

    # MLPReadout: Linear(d, d/2) -> relu -> Linear(d/2, d/4) -> relu -> Linear(d/4, n_classes)
    fcs = []
    for l in range(n_layers):
        fc_layers = []
        kk = jax.random.split(keys[1 + n_layers + l], mlp_L + 1)
        dim = out_dim
        for j in range(mlp_L):
            fc_layers.append(dense(kk[j], dim // (2 ** j), dim // (2 ** (j + 1))))
        fc_layers.append(dense(kk[mlp_L], dim // (2 ** mlp_L), n_classes))
        fcs.append(fc_layers)
    params["fcs"] = fcs
    return params


def prepare_params(params, in_dim, hidden_dim, out_dim, n_classes):
    """Pad to lane-dense shapes, fold eval-BN into weights, cast bf16 once."""
    IN_pad = _round_up(in_dim, 128)
    H_pad = _round_up(hidden_dim, 128)
    C_pad = _round_up(n_classes, 128)
    prep = {}

    # embedding_h
    w = jnp.zeros((IN_pad, H_pad), jnp.float32).at[:in_dim, :hidden_dim].set(params["emb_w"])
    b = jnp.zeros((1, H_pad), jnp.float32).at[0, :hidden_dim].set(params["emb_b"])
    prep["emb_w"] = w.astype(jnp.bfloat16)
    prep["emb_b"] = b

    # SAGE layers: fold BN scale into the weights, bias + BN shift into one shift.
    layers = []
    for lp in params["layers"]:
        out = lp["w_root"].shape[1]
        scale = lp["bn_scale"]
        wr = lp["w_root"] * scale[None, :]
        wn = lp["w_neigh"] * scale[None, :]
        shift = lp["b"] * scale + lp["bn_shift"]
        Wr = jnp.zeros((H_pad, H_pad), jnp.float32).at[:hidden_dim, :out].set(wr)
        Wn = jnp.zeros((H_pad, H_pad), jnp.float32).at[:hidden_dim, :out].set(wn)
        sh = jnp.zeros((1, H_pad), jnp.float32).at[0, :out].set(shift)
        layers.append((Wr.astype(jnp.bfloat16), Wn.astype(jnp.bfloat16), sh))
    prep["layers"] = layers

    # MLPReadout heads, padded lane-dense and stacked over heads.
    d0, d1, d2 = out_dim, out_dim // 2, out_dim // 4
    D1 = _round_up(d1, 128)
    D2 = _round_up(d2, 128)
    W1s, b1s, W2s, b2s, W3s, b3s = [], [], [], [], [], []
    for fc in params["fcs"]:
        (w1, bb1), (w2, bb2), (w3, bb3) = fc
        W1s.append(jnp.zeros((H_pad, D1), jnp.float32).at[:d0, :d1].set(w1))
        b1s.append(jnp.zeros((1, D1), jnp.float32).at[0, :d1].set(bb1))
        W2s.append(jnp.zeros((D1, D2), jnp.float32).at[:d1, :d2].set(w2))
        b2s.append(jnp.zeros((1, D2), jnp.float32).at[0, :d2].set(bb2))
        W3s.append(jnp.zeros((D2, C_pad), jnp.float32).at[:d2, :n_classes].set(w3))
        b3s.append(jnp.zeros((1, C_pad), jnp.float32).at[0, :n_classes].set(bb3))
    prep["mlp"] = (jnp.stack(W1s).astype(jnp.bfloat16), jnp.stack(b1s),
                   jnp.stack(W2s).astype(jnp.bfloat16), jnp.stack(b2s),
                   jnp.stack(W3s).astype(jnp.bfloat16), jnp.stack(b3s))
    return prep


# ----------------------------------------------------------------------------
# Forward pass
# ----------------------------------------------------------------------------
@functools.partial(jax.jit, static_argnames=("num_graphs", "out_dim", "n_classes",
                                             "readout", "residual"))
def sage_forward(prep, x, edge_index, batch, *, num_graphs, out_dim, n_classes,
                 readout="mean", residual=True):
    N, in_dim = x.shape
    IN_pad, H_pad = prep["emb_w"].shape

    # Row-tile size: 256-row lane-dense tiles for large graphs (pipelined, the full h
    # stays resident in VMEM); whole graph in one block for small ones.  Sublane rows
    # rounded to 16 for bf16 packing.
    if N <= 256:
        tm = _round_up(max(N, 16), 16)
        N_pad = tm
    else:
        tm = 256
        N_pad = _round_up(N, tm)
    G_pad = _round_up(max(num_graphs, 8), 8)

    # ---- plain-JAX glue: pad features, dense row-normalized adjacency, pooling matrix ----
    # TODO(synk): for large graphs replace the dense O(N^2) adjacency / one-hot pool with a
    # CSR + scalar-prefetch gather (or segment_sum) path; dense adj won't scale to v7x VMEM.
    x_pad = jnp.zeros((N_pad, IN_pad), jnp.float32).at[:N, :in_dim].set(x)
    x_pad = x_pad.astype(jnp.bfloat16)

    src, dst = edge_index[0], edge_index[1]
    adj = jnp.zeros((N_pad, N_pad), jnp.float32).at[dst, src].add(1.0)
    deg = jnp.maximum(adj.sum(axis=1, keepdims=True), 1.0)
    adj = (adj / deg).astype(jnp.bfloat16)                    # 'mean' aggregator

    pool = jnp.zeros((G_pad, N_pad), jnp.float32).at[batch, jnp.arange(N)].set(1.0)
    if readout != "sum":
        # 'mean' readout. TODO(synk): 'max' readout (global_max_pool) not implemented; falls back to mean.
        counts = jnp.maximum(pool.sum(axis=1, keepdims=True), 1.0)
        pool = pool / counts
    pool = pool.astype(jnp.bfloat16)

    # ---- embedding_h (+ eval in_feat_dropout = identity) ----
    h = pallas_embed(x_pad, prep["emb_w"], prep["emb_b"], tm)

    # ---- SAGE layers: aggregation + matmuls + BN + relu + residual + pooling fused ----
    feature_list = []
    pooled_padded = []
    for (Wr, Wn, sh) in prep["layers"]:
        h, pooled = pallas_sage_layer(adj, h, pool, Wr, Wn, sh, tm=tm, residual=residual)
        pooled_padded.append(pooled)
        feature_list.append(pooled[:num_graphs, :out_dim])

    # ---- per-layer MLPReadout heads, one fused pallas_call (grid over heads) ----
    feats = jnp.stack(pooled_padded).astype(jnp.bfloat16)     # (L, G_pad, H_pad)
    W1, b1, W2, b2, W3, b3 = prep["mlp"]
    outs = pallas_mlp_heads(feats, W1, b1, W2, b2, W3, b3)    # (L, G_pad, C_pad) f32
    output_list = [outs[l, :num_graphs, :n_classes] for l in range(len(prep["layers"]))]

    return output_list, feature_list


# ----------------------------------------------------------------------------
# Demo
# ----------------------------------------------------------------------------
if __name__ == "__main__":
    in_dim = 8
    hidden_dim = 32
    out_dim = 32        # must equal hidden_dim (module raises otherwise)
    n_classes = 4
    n_layers = 2        # net_params['L']
    num_nodes = 16
    num_graphs = 2

    key = jax.random.PRNGKey(0)
    k_feat, k_param = jax.random.split(key)

    # node features
    x = jax.random.normal(k_feat, (num_nodes, in_dim), jnp.float32)

    # two graphs of 8 nodes each; bidirectional ring edges within each graph
    src_list, dst_list = [], []
    for g in range(num_graphs):
        base = g * 8
        for i in range(8):
            a, b = base + i, base + (i + 1) % 8
            src_list += [a, b]
            dst_list += [b, a]
    edge_index = jnp.array([src_list, dst_list], dtype=jnp.int32)   # (2, 32)

    # node -> graph assignment
    batch = jnp.array([0] * 8 + [1] * 8, dtype=jnp.int32)

    raw_params = init_params(k_param, in_dim, hidden_dim, out_dim, n_classes, n_layers)
    prep = prepare_params(raw_params, in_dim, hidden_dim, out_dim, n_classes)

    output_list, feature_list = sage_forward(
        prep, x, edge_index, batch,
        num_graphs=num_graphs, out_dim=out_dim, n_classes=n_classes,
        readout="mean", residual=True)

    for o in output_list:
        jax.block_until_ready(o)
    for f in feature_list:
        jax.block_until_ready(f)

    assert len(output_list) == n_layers and len(feature_list) == n_layers
    assert output_list[0].shape == (num_graphs, n_classes)
    assert feature_list[0].shape == (num_graphs, out_dim)

    print("KERNEL_OK")
</pallas_src>

<mosaic_0001>
module attributes {stable_mosaic.version = 11 : i64} {
  func.func private @main(%arg0: i32) attributes {dimension_semantics = [#tpu.dimension_semantics<core_parallel>], iteration_bounds = array<i64: 2>, tpu.core_type = #tpu.core_type<sc_scalar_subcore>, window_params = []} {
    return
  }
}

module attributes {stable_mosaic.version = 11 : i64} {
  func.func private @main(%arg0: i32) attributes {dimension_semantics = [#tpu.dimension_semantics<core_parallel>], iteration_bounds = array<i64: 2>, tpu.core_type = #tpu.core_type<sc_scalar_subcore>, window_params = []} {
    return
  }
}

module attributes {stable_mosaic.version = 11 : i64} {
  func.func @_embed_kernel(%arg0: i32, %arg1: memref<16x128xbf16, #tpu.memory_space<vmem>>, %arg2: memref<128x128xbf16, #tpu.memory_space<vmem>>, %arg3: memref<1x128xf32, #tpu.memory_space<vmem>>, %arg4: memref<16x128xbf16, #tpu.memory_space<vmem>>) attributes {dimension_semantics = [#tpu.dimension_semantics<parallel>], iteration_bounds = array<i64: 1>, scalar_prefetch = 0 : i64, scratch_operands = 0 : i64, tpu.core_type = #tpu.core_type<tc>, window_params = [{transform_indices = @transform_0, window_bounds = array<i64: 16, 128>}, {pipeline_mode = #tpu.pipeline_mode<synchronous>, transform_indices = @transform_1, window_bounds = array<i64: 128, 128>}, {pipeline_mode = #tpu.pipeline_mode<synchronous>, transform_indices = @transform_2, window_bounds = array<i64: 1, 128>}, {transform_indices = @transform_3, window_bounds = array<i64: 16, 128>}]} {
    %c0 = arith.constant 0 : index
    %c0_0 = arith.constant 0 : index
    %0 = vector.load %arg1[%c0, %c0_0] : memref<16x128xbf16, #tpu.memory_space<vmem>>, vector<16x128xbf16>
    %c0_1 = arith.constant 0 : index
    %c0_2 = arith.constant 0 : index
    %1 = vector.load %arg2[%c0_1, %c0_2] : memref<128x128xbf16, #tpu.memory_space<vmem>>, vector<128x128xbf16>
    %cst = arith.constant dense<0.000000e+00> : vector<16x128xf32>
    %2 = tpu.matmul %0, %1, %cst {dimension_numbers = #tpu.dot_dimension_numbers<[1], [0], [0], [1], [0, 0, 1, 1], [], []>} : vector<16x128xbf16>, vector<128x128xbf16>, vector<16x128xf32> -> vector<16x128xf32>
    %c0_3 = arith.constant 0 : index
    %c0_4 = arith.constant 0 : index
    %3 = vector.load %arg3[%c0_3, %c0_4] : memref<1x128xf32, #tpu.memory_space<vmem>>, vector<1x128xf32>
    %4 = vector.broadcast %3 : vector<1x128xf32> to vector<16x128xf32>
    %5 = arith.addf %2, %4 : vector<16x128xf32>
    %6 = arith.truncf %5 : vector<16x128xf32> to vector<16x128xbf16>
    %c0_5 = arith.constant 0 : index
    %c0_6 = arith.constant 0 : index
    %7 = vector.load %arg4[%c0_5, %c0_6] : memref<16x128xbf16, #tpu.memory_space<vmem>>, vector<16x128xbf16>
    tpu.vector_store %arg4[%c0_5, %c0_6], %6 {strides = array<i32>} : memref<16x128xbf16, #tpu.memory_space<vmem>>, vector<16x128xbf16>,
    return
  }
  func.func @transform_0(%arg0: i32) -> (i32, i32) {
    %c0_i32 = arith.constant 0 : i32
    %c0_i32_0 = arith.constant 0 : i32
    return %arg0, %c0_i32 : i32, i32
  }
  func.func @transform_1(%arg0: i32) -> (i32, i32) {
    %c0_i32 = arith.constant 0 : i32
    %c0_i32_0 = arith.constant 0 : i32
    %c0_i32_1 = arith.constant 0 : i32
    return %c0_i32, %c0_i32_0 : i32, i32
  }
  func.func @transform_2(%arg0: i32) -> (i32, i32) {
    %c0_i32 = arith.constant 0 : i32
    %c0_i32_0 = arith.constant 0 : i32
    %c0_i32_1 = arith.constant 0 : i32
    return %c0_i32, %c0_i32_0 : i32, i32
  }
  func.func @transform_3(%arg0: i32) -> (i32, i32) {
    %c0_i32 = arith.constant 0 : i32
    %c0_i32_0 = arith.constant 0 : i32
    return %arg0, %c0_i32 : i32, i32
  }
}

module attributes {stable_mosaic.version = 11 : i64} {
  func.func @_sage_layer_kernel(%arg0: i32, %arg1: memref<16x16xbf16, #tpu.memory_space<vmem>>, %arg2: memref<16x128xbf16, #tpu.memory_space<vmem>>, %arg3: memref<8x16xbf16, #tpu.memory_space<vmem>>, %arg4: memref<128x128xbf16, #tpu.memory_space<vmem>>, %arg5: memref<128x128xbf16, #tpu.memory_space<vmem>>, %arg6: memref<1x128xf32, #tpu.memory_space<vmem>>, %arg7: memref<16x128xbf16, #tpu.memory_space<vmem>>, %arg8: memref<8x128xf32, #tpu.memory_space<vmem>>) attributes {dimension_semantics = [#tpu.dimension_semantics<arbitrary>], iteration_bounds = array<i64: 1>, scalar_prefetch = 0 : i64, scratch_operands = 0 : i64, tpu.core_type = #tpu.core_type<tc>, window_params = [{transform_indices = @transform_0, window_bounds = array<i64: 16, 16>}, {pipeline_mode = #tpu.pipeline_mode<synchronous>, transform_indices = @transform_1, window_bounds = array<i64: 16, 128>}, {transform_indices = @transform_2, window_bounds = array<i64: 8, 16>}, {pipeline_mode = #tpu.pipeline_mode<synchronous>, transform_indices = @transform_3, window_bounds = array<i64: 128, 128>}, {pipeline_mode = #tpu.pipeline_mode<synchronous>, transform_indices = @transform_4, window_bounds = array<i64: 128, 128>}, {pipeline_mode = #tpu.pipeline_mode<synchronous>, transform_indices = @transform_5, window_bounds = array<i64: 1, 128>}, {transform_indices = @transform_6, window_bounds = array<i64: 16, 128>}, {pipeline_mode = #tpu.pipeline_mode<synchronous>, transform_indices = @transform_7, window_bounds = array<i64: 8, 128>}]} {
    %c0 = arith.constant 0 : index
    %c0_0 = arith.constant 0 : index
    %0 = vector.load %arg1[%c0, %c0_0] : memref<16x16xbf16, #tpu.memory_space<vmem>>, vector<16x16xbf16>
    %c0_1 = arith.constant 0 : index
    %c0_2 = arith.constant 0 : index
    %1 = vector.load %arg2[%c0_1, %c0_2] : memref<16x128xbf16, #tpu.memory_space<vmem>>, vector<16x128xbf16>
    %cst = arith.constant dense<0.000000e+00> : vector<16x128xf32>
    %2 = tpu.matmul %0, %1, %cst {dimension_numbers = #tpu.dot_dimension_numbers<[1], [0], [0], [1], [0, 0, 1, 1], [], []>} : vector<16x16xbf16>, vector<16x128xbf16>, vector<16x128xf32> -> vector<16x128xf32>
    %c16_i32 = arith.constant 16 : i32
    %3 = arith.muli %arg0, %c16_i32 : i32
    %4 = tpu.assume_multiple %3, 16 : i32
    %5 = arith.index_cast %4 : i32 to index
    %c0_3 = arith.constant 0 : index
    %6 = vector.load %arg2[%5, %c0_3] : memref<16x128xbf16, #tpu.memory_space<vmem>>, vector<16x128xbf16>
    %c0_4 = arith.constant 0 : index
    %c0_5 = arith.constant 0 : index
    %7 = vector.load %arg4[%c0_4, %c0_5] : memref<128x128xbf16, #tpu.memory_space<vmem>>, vector<128x128xbf16>
    %cst_6 = arith.constant dense<0.000000e+00> : vector<16x128xf32>
    %8 = tpu.matmul %6, %7, %cst_6 {dimension_numbers = #tpu.dot_dimension_numbers<[1], [0], [0], [1], [0, 0, 1, 1], [], []>} : vector<16x128xbf16>, vector<128x128xbf16>, vector<16x128xf32> -> vector<16x128xf32>
    %9 = arith.truncf %2 : vector<16x128xf32> to vector<16x128xbf16>
    %c0_7 = arith.constant 0 : index
    %c0_8 = arith.constant 0 : index
    %10 = vector.load %arg5[%c0_7, %c0_8] : memref<128x128xbf16, #tpu.memory_space<vmem>>, vector<128x128xbf16>
    %cst_9 = arith.constant dense<0.000000e+00> : vector<16x128xf32>
    %11 = tpu.matmul %9, %10, %cst_9 {dimension_numbers = #tpu.dot_dimension_numbers<[1], [0], [0], [1], [0, 0, 1, 1], [], []>} : vector<16x128xbf16>, vector<128x128xbf16>, vector<16x128xf32> -> vector<16x128xf32>
    %12 = arith.addf %8, %11 : vector<16x128xf32>
    %c0_10 = arith.constant 0 : index
    %c0_11 = arith.constant 0 : index
    %13 = vector.load %arg6[%c0_10, %c0_11] : memref<1x128xf32, #tpu.memory_space<vmem>>, vector<1x128xf32>
    %14 = vector.broadcast %13 : vector<1x128xf32> to vector<16x128xf32>
    %15 = arith.addf %12, %14 : vector<16x128xf32>
    %cst_12 = arith.constant 0.000000e+00 : f32
    %16 = vector.broadcast %cst_12 : f32 to vector<16x128xf32>
    %17 = arith.maximumf %15, %16 : vector<16x128xf32>
    %18 = arith.extf %6 : vector<16x128xbf16> to vector<16x128xf32>
    %19 = arith.addf %17, %18 : vector<16x128xf32>
    %20 = arith.truncf %19 : vector<16x128xf32> to vector<16x128xbf16>
    %c0_13 = arith.constant 0 : index
    %c0_14 = arith.constant 0 : index
    %21 = vector.load %arg7[%c0_13, %c0_14] : memref<16x128xbf16, #tpu.memory_space<vmem>>, vector<16x128xbf16>
    tpu.vector_store %arg7[%c0_13, %c0_14], %20 {strides = array<i32>} : memref<16x128xbf16, #tpu.memory_space<vmem>>, vector<16x128xbf16>,
    %c0_i32 = arith.constant 0 : i32
    %22 = arith.cmpi eq, %arg0, %c0_i32 : i32
    %23 = arith.extui %22 : i1 to i32
    %c0_i32_15 = arith.constant 0 : i32
    %24 = arith.cmpi ne, %23, %c0_i32_15 : i32
    scf.if %24 {
      %cst_23 = arith.constant 0.000000e+00 : f32
      %30 = vector.broadcast %cst_23 : f32 to vector<8x128xf32>
      %c0_24 = arith.constant 0 : index
      %c0_25 = arith.constant 0 : index
      %31 = vector.load %arg8[%c0_24, %c0_25] : memref<8x128xf32, #tpu.memory_space<vmem>>, vector<8x128xf32>
      tpu.vector_store %arg8[%c0_24, %c0_25], %30 {strides = array<i32>} : memref<8x128xf32, #tpu.memory_space<vmem>>, vector<8x128xf32>,
    } else {
    }
    %c0_16 = arith.constant 0 : index
    %c0_17 = arith.constant 0 : index
    %25 = vector.load %arg8[%c0_16, %c0_17] : memref<8x128xf32, #tpu.memory_space<vmem>>, vector<8x128xf32>
    %c0_18 = arith.constant 0 : index
    %c0_19 = arith.constant 0 : index
    %26 = vector.load %arg3[%c0_18, %c0_19] : memref<8x16xbf16, #tpu.memory_space<vmem>>, vector<8x16xbf16>
    %cst_20 = arith.constant dense<0.000000e+00> : vector<8x128xf32>
    %27 = tpu.matmul %26, %20, %cst_20 {dimension_numbers = #tpu.dot_dimension_numbers<[1], [0], [0], [1], [0, 0, 1, 1], [], []>} : vector<8x16xbf16>, vector<16x128xbf16>, vector<8x128xf32> -> vector<8x128xf32>
    %28 = arith.addf %25, %27 : vector<8x128xf32>
    %c0_21 = arith.constant 0 : index
    %c0_22 = arith.constant 0 : index
    %29 = vector.load %arg8[%c0_21, %c0_22] : memref<8x128xf32, #tpu.memory_space<vmem>>, vector<8x128xf32>
    tpu.vector_store %arg8[%c0_21, %c0_22], %28 {strides = array<i32>} : memref<8x128xf32, #tpu.memory_space<vmem>>, vector<8x128xf32>,
    return
  }
  func.func @transform_0(%arg0: i32) -> (i32, i32) {
    %c0_i32 = arith.constant 0 : i32
    %c0_i32_0 = arith.constant 0 : i32
    return %arg0, %c0_i32 : i32, i32
  }
  func.func @transform_1(%arg0: i32) -> (i32, i32) {
    %c0_i32 = arith.constant 0 : i32
    %c0_i32_0 = arith.constant 0 : i32
    %c0_i32_1 = arith.constant 0 : i32
    return %c0_i32, %c0_i32_0 : i32, i32
  }
  func.func @transform_2(%arg0: i32) -> (i32, i32) {
    %c0_i32 = arith.constant 0 : i32
    %c0_i32_0 = arith.constant 0 : i32
    return %c0_i32, %arg0 : i32, i32
  }
  func.func @transform_3(%arg0: i32) -> (i32, i32) {
    %c0_i32 = arith.constant 0 : i32
    %c0_i32_0 = arith.constant 0 : i32
    %c0_i32_1 = arith.constant 0 : i32
    return %c0_i32, %c0_i32_0 : i32, i32
  }
  func.func @transform_4(%arg0: i32) -> (i32, i32) {
    %c0_i32 = arith.constant 0 : i32
    %c0_i32_0 = arith.constant 0 : i32
    %c0_i32_1 = arith.constant 0 : i32
    return %c0_i32, %c0_i32_0 : i32, i32
  }
  func.func @transform_5(%arg0: i32) -> (i32, i32) {
    %c0_i32 = arith.constant 0 : i32
    %c0_i32_0 = arith.constant 0 : i32
    %c0_i32_1 = arith.constant 0 : i32
    return %c0_i32, %c0_i32_0 : i32, i32
  }
  func.func @transform_6(%arg0: i32) -> (i32, i32) {
    %c0_i32 = arith.constant 0 : i32
    %c0_i32_0 = arith.constant 0 : i32
    return %arg0, %c0_i32 : i32, i32
  }
  func.func @transform_7(%arg0: i32) -> (i32, i32) {
    %c0_i32 = arith.constant 0 : i32
    %c0_i32_0 = arith.constant 0 : i32
    %c0_i32_1 = arith.constant 0 : i32
    return %c0_i32, %c0_i32_0 : i32, i32
  }
}

module attributes {stable_mosaic.version = 11 : i64} {
  func.func @_sage_layer_kernel(%arg0: i32, %arg1: memref<16x16xbf16, #tpu.memory_space<vmem>>, %arg2: memref<16x128xbf16, #tpu.memory_space<vmem>>, %arg3: memref<8x16xbf16, #tpu.memory_space<vmem>>, %arg4: memref<128x128xbf16, #tpu.memory_space<vmem>>, %arg5: memref<128x128xbf16, #tpu.memory_space<vmem>>, %arg6: memref<1x128xf32, #tpu.memory_space<vmem>>, %arg7: memref<16x128xbf16, #tpu.memory_space<vmem>>, %arg8: memref<8x128xf32, #tpu.memory_space<vmem>>) attributes {dimension_semantics = [#tpu.dimension_semantics<arbitrary>], iteration_bounds = array<i64: 1>, scalar_prefetch = 0 : i64, scratch_operands = 0 : i64, tpu.core_type = #tpu.core_type<tc>, window_params = [{transform_indices = @transform_0, window_bounds = array<i64: 16, 16>}, {pipeline_mode = #tpu.pipeline_mode<synchronous>, transform_indices = @transform_1, window_bounds = array<i64: 16, 128>}, {transform_indices = @transform_2, window_bounds = array<i64: 8, 16>}, {pipeline_mode = #tpu.pipeline_mode<synchronous>, transform_indices = @transform_3, window_bounds = array<i64: 128, 128>}, {pipeline_mode = #tpu.pipeline_mode<synchronous>, transform_indices = @transform_4, window_bounds = array<i64: 128, 128>}, {pipeline_mode = #tpu.pipeline_mode<synchronous>, transform_indices = @transform_5, window_bounds = array<i64: 1, 128>}, {transform_indices = @transform_6, window_bounds = array<i64: 16, 128>}, {pipeline_mode = #tpu.pipeline_mode<synchronous>, transform_indices = @transform_7, window_bounds = array<i64: 8, 128>}]} {
    %c0 = arith.constant 0 : index
    %c0_0 = arith.constant 0 : index
    %0 = vector.load %arg1[%c0, %c0_0] : memref<16x16xbf16, #tpu.memory_space<vmem>>, vector<16x16xbf16>
    %c0_1 = arith.constant 0 : index
    %c0_2 = arith.constant 0 : index
    %1 = vector.load %arg2[%c0_1, %c0_2] : memref<16x128xbf16, #tpu.memory_space<vmem>>, vector<16x128xbf16>
    %cst = arith.constant dense<0.000000e+00> : vector<16x128xf32>
    %2 = tpu.matmul %0, %1, %cst {dimension_numbers = #tpu.dot_dimension_numbers<[1], [0], [0], [1], [0, 0, 1, 1], [], []>} : vector<16x16xbf16>, vector<16x128xbf16>, vector<16x128xf32> -> vector<16x128xf32>
    %c16_i32 = arith.constant 16 : i32
    %3 = arith.muli %arg0, %c16_i32 : i32
    %4 = tpu.assume_multiple %3, 16 : i32
    %5 = arith.index_cast %4 : i32 to index
    %c0_3 = arith.constant 0 : index
    %6 = vector.load %arg2[%5, %c0_3] : memref<16x128xbf16, #tpu.memory_space<vmem>>, vector<16x128xbf16>
    %c0_4 = arith.constant 0 : index
    %c0_5 = arith.constant 0 : index
    %7 = vector.load %arg4[%c0_4, %c0_5] : memref<128x128xbf16, #tpu.memory_space<vmem>>, vector<128x128xbf16>
    %cst_6 = arith.constant dense<0.000000e+00> : vector<16x128xf32>
    %8 = tpu.matmul %6, %7, %cst_6 {dimension_numbers = #tpu.dot_dimension_numbers<[1], [0], [0], [1], [0, 0, 1, 1], [], []>} : vector<16x128xbf16>, vector<128x128xbf16>, vector<16x128xf32> -> vector<16x128xf32>
    %9 = arith.truncf %2 : vector<16x128xf32> to vector<16x128xbf16>
    %c0_7 = arith.constant 0 : index
    %c0_8 = arith.constant 0 : index
    %10 = vector.load %arg5[%c0_7, %c0_8] : memref<128x128xbf16, #tpu.memory_space<vmem>>, vector<128x128xbf16>
    %cst_9 = arith.constant dense<0.000000e+00> : vector<16x128xf32>
    %11 = tpu.matmul %9, %10, %cst_9 {dimension_numbers = #tpu.dot_dimension_numbers<[1], [0], [0], [1], [0, 0, 1, 1], [], []>} : vector<16x128xbf16>, vector<128x128xbf16>, vector<16x128xf32> -> vector<16x128xf32>
    %12 = arith.addf %8, %11 : vector<16x128xf32>
    %c0_10 = arith.constant 0 : index
    %c0_11 = arith.constant 0 : index
    %13 = vector.load %arg6[%c0_10, %c0_11] : memref<1x128xf32, #tpu.memory_space<vmem>>, vector<1x128xf32>
    %14 = vector.broadcast %13 : vector<1x128xf32> to vector<16x128xf32>
    %15 = arith.addf %12, %14 : vector<16x128xf32>
    %cst_12 = arith.constant 0.000000e+00 : f32
    %16 = vector.broadcast %cst_12 : f32 to vector<16x128xf32>
    %17 = arith.maximumf %15, %16 : vector<16x128xf32>
    %18 = arith.extf %6 : vector<16x128xbf16> to vector<16x128xf32>
    %19 = arith.addf %17, %18 : vector<16x128xf32>
    %20 = arith.truncf %19 : vector<16x128xf32> to vector<16x128xbf16>
    %c0_13 = arith.constant 0 : index
    %c0_14 = arith.constant 0 : index
    %21 = vector.load %arg7[%c0_13, %c0_14] : memref<16x128xbf16, #tpu.memory_space<vmem>>, vector<16x128xbf16>
    tpu.vector_store %arg7[%c0_13, %c0_14], %20 {strides = array<i32>} : memref<16x128xbf16, #tpu.memory_space<vmem>>, vector<16x128xbf16>,
    %c0_i32 = arith.constant 0 : i32
    %22 = arith.cmpi eq, %arg0, %c0_i32 : i32
    %23 = arith.extui %22 : i1 to i32
    %c0_i32_15 = arith.constant 0 : i32
    %24 = arith.cmpi ne, %23, %c0_i32_15 : i32
    scf.if %24 {
      %cst_23 = arith.constant 0.000000e+00 : f32
      %30 = vector.broadcast %cst_23 : f32 to vector<8x128xf32>
      %c0_24 = arith.constant 0 : index
      %c0_25 = arith.constant 0 : index
      %31 = vector.load %arg8[%c0_24, %c0_25] : memref<8x128xf32, #tpu.memory_space<vmem>>, vector<8x128xf32>
      tpu.vector_store %arg8[%c0_24, %c0_25], %30 {strides = array<i32>} : memref<8x128xf32, #tpu.memory_space<vmem>>, vector<8x128xf32>,
    } else {
    }
    %c0_16 = arith.constant 0 : index
    %c0_17 = arith.constant 0 : index
    %25 = vector.load %arg8[%c0_16, %c0_17] : memref<8x128xf32, #tpu.memory_space<vmem>>, vector<8x128xf32>
    %c0_18 = arith.constant 0 : index
    %c0_19 = arith.constant 0 : index
    %26 = vector.load %arg3[%c0_18, %c0_19] : memref<8x16xbf16, #tpu.memory_space<vmem>>, vector<8x16xbf16>
    %cst_20 = arith.constant dense<0.000000e+00> : vector<8x128xf32>
    %27 = tpu.matmul %26, %20, %cst_20 {dimension_numbers = #tpu.dot_dimension_numbers<[1], [0], [0], [1], [0, 0, 1, 1], [], []>} : vector<8x16xbf16>, vector<16x128xbf16>, vector<8x128xf32> -> vector<8x128xf32>
    %28 = arith.addf %25, %27 : vector<8x128xf32>
    %c0_21 = arith.constant 0 : index
    %c0_22 = arith.constant 0 : index
    %29 = vector.load %arg8[%c0_21, %c0_22] : memref<8x128xf32, #tpu.memory_space<vmem>>, vector<8x128xf32>
    tpu.vector_store %arg8[%c0_21, %c0_22], %28 {strides = array<i32>} : memref<8x128xf32, #tpu.memory_space<vmem>>, vector<8x128xf32>,
    return
  }
  func.func @transform_0(%arg0: i32) -> (i32, i32) {
    %c0_i32 = arith.constant 0 : i32
    %c0_i32_0 = arith.constant 0 : i32
    return %arg0, %c0_i32 : i32, i32
  }
  func.func @transform_1(%arg0: i32) -> (i32, i32) {
    %c0_i32 = arith.constant 0 : i32
    %c0_i32_0 = arith.constant 0 : i32
    %c0_i32_1 = arith.constant 0 : i32
    return %c0_i32, %c0_i32_0 : i32, i32
  }
  func.func @transform_2(%arg0: i32) -> (i32, i32) {
    %c0_i32 = arith.constant 0 : i32
    %c0_i32_0 = arith.constant 0 : i32
    return %c0_i32, %arg0 : i32, i32
  }
  func.func @transform_3(%arg0: i32) -> (i32, i32) {
    %c0_i32 = arith.constant 0 : i32
    %c0_i32_0 = arith.constant 0 : i32
    %c0_i32_1 = arith.constant 0 : i32
    return %c0_i32, %c0_i32_0 : i32, i32
  }
  func.func @transform_4(%arg0: i32) -> (i32, i32) {
    %c0_i32 = arith.constant 0 : i32
    %c0_i32_0 = arith.constant 0 : i32
    %c0_i32_1 = arith.constant 0 : i32
    return %c0_i32, %c0_i32_0 : i32, i32
  }
  func.func @transform_5(%arg0: i32) -> (i32, i32) {
    %c0_i32 = arith.constant 0 : i32
    %c0_i32_0 = arith.constant 0 : i32
    %c0_i32_1 = arith.constant 0 : i32
    return %c0_i32, %c0_i32_0 : i32, i32
  }
  func.func @transform_6(%arg0: i32) -> (i32, i32) {
    %c0_i32 = arith.constant 0 : i32
    %c0_i32_0 = arith.constant 0 : i32
    return %arg0, %c0_i32 : i32, i32
  }
  func.func @transform_7(%arg0: i32) -> (i32, i32) {
    %c0_i32 = arith.constant 0 : i32
    %c0_i32_0 = arith.constant 0 : i32
    %c0_i32_1 = arith.constant 0 : i32
    return %c0_i32, %c0_i32_0 : i32, i32
  }
}

module attributes {stable_mosaic.version = 11 : i64} {
  func.func @_mlp_head_kernel(%arg0: i32, %arg1: memref<1x8x128xbf16, #tpu.memory_space<vmem>>, %arg2: memref<1x128x128xbf16, #tpu.memory_space<vmem>>, %arg3: memref<1x1x128xf32, #tpu.memory_space<vmem>>, %arg4: memref<1x128x128xbf16, #tpu.memory_space<vmem>>, %arg5: memref<1x1x128xf32, #tpu.memory_space<vmem>>, %arg6: memref<1x128x128xbf16, #tpu.memory_space<vmem>>, %arg7: memref<1x1x128xf32, #tpu.memory_space<vmem>>, %arg8: memref<1x8x128xf32, #tpu.memory_space<vmem>>) attributes {dimension_semantics = [#tpu.dimension_semantics<parallel>], iteration_bounds = array<i64: 2>, scalar_prefetch = 0 : i64, scratch_operands = 0 : i64, tpu.core_type = #tpu.core_type<tc>, window_params = [{transform_indices = @transform_0, window_bounds = array<i64: 1, 8, 128>}, {transform_indices = @transform_1, window_bounds = array<i64: 1, 128, 128>}, {transform_indices = @transform_2, window_bounds = array<i64: 1, 1, 128>}, {transform_indices = @transform_3, window_bounds = array<i64: 1, 128, 128>}, {transform_indices = @transform_4, window_bounds = array<i64: 1, 1, 128>}, {transform_indices = @transform_5, window_bounds = array<i64: 1, 128, 128>}, {transform_indices = @transform_6, window_bounds = array<i64: 1, 1, 128>}, {transform_indices = @transform_7, window_bounds = array<i64: 1, 8, 128>}]} {
    %c0 = arith.constant 0 : index
    %c0_0 = arith.constant 0 : index
    %c0_1 = arith.constant 0 : index
    %0 = vector.load %arg1[%c0, %c0_0, %c0_1] : memref<1x8x128xbf16, #tpu.memory_space<vmem>>, vector<1x8x128xbf16>
    %1 = vector.shape_cast %0 : vector<1x8x128xbf16> to vector<8x128xbf16>
    %c0_2 = arith.constant 0 : index
    %c0_3 = arith.constant 0 : index
    %c0_4 = arith.constant 0 : index
    %2 = vector.load %arg2[%c0_2, %c0_3, %c0_4] : memref<1x128x128xbf16, #tpu.memory_space<vmem>>, vector<1x128x128xbf16>
    %3 = vector.shape_cast %2 : vector<1x128x128xbf16> to vector<128x128xbf16>
    %cst = arith.constant dense<0.000000e+00> : vector<8x128xf32>
    %4 = tpu.matmul %1, %3, %cst {dimension_numbers = #tpu.dot_dimension_numbers<[1], [0], [0], [1], [0, 0, 1, 1], [], []>} : vector<8x128xbf16>, vector<128x128xbf16>, vector<8x128xf32> -> vector<8x128xf32>
    %c0_5 = arith.constant 0 : index
    %c0_6 = arith.constant 0 : index
    %c0_7 = arith.constant 0 : index
    %5 = vector.load %arg3[%c0_5, %c0_6, %c0_7] : memref<1x1x128xf32, #tpu.memory_space<vmem>>, vector<1x1x128xf32>
    %6 = vector.shape_cast %5 : vector<1x1x128xf32> to vector<1x128xf32>
    %7 = vector.broadcast %6 : vector<1x128xf32> to vector<8x128xf32>
    %8 = arith.addf %4, %7 : vector<8x128xf32>
    %cst_8 = arith.constant 0.000000e+00 : f32
    %9 = vector.broadcast %cst_8 : f32 to vector<8x128xf32>
    %10 = arith.maximumf %8, %9 : vector<8x128xf32>
    %11 = arith.truncf %10 : vector<8x128xf32> to vector<8x128xbf16>
    %c0_9 = arith.constant 0 : index
    %c0_10 = arith.constant 0 : index
    %c0_11 = arith.constant 0 : index
    %12 = vector.load %arg4[%c0_9, %c0_10, %c0_11] : memref<1x128x128xbf16, #tpu.memory_space<vmem>>, vector<1x128x128xbf16>
    %13 = vector.shape_cast %12 : vector<1x128x128xbf16> to vector<128x128xbf16>
    %cst_12 = arith.constant dense<0.000000e+00> : vector<8x128xf32>
    %14 = tpu.matmul %11, %13, %cst_12 {dimension_numbers = #tpu.dot_dimension_numbers<[1], [0], [0], [1], [0, 0, 1, 1], [], []>} : vector<8x128xbf16>, vector<128x128xbf16>, vector<8x128xf32> -> vector<8x128xf32>
    %c0_13 = arith.constant 0 : index
    %c0_14 = arith.constant 0 : index
    %c0_15 = arith.constant 0 : index
    %15 = vector.load %arg5[%c0_13, %c0_14, %c0_15] : memref<1x1x128xf32, #tpu.memory_space<vmem>>, vector<1x1x128xf32>
    %16 = vector.shape_cast %15 : vector<1x1x128xf32> to vector<1x128xf32>
    %17 = vector.broadcast %16 : vector<1x128xf32> to vector<8x128xf32>
    %18 = arith.addf %14, %17 : vector<8x128xf32>
    %cst_16 = arith.constant 0.000000e+00 : f32
    %19 = vector.broadcast %cst_16 : f32 to vector<8x128xf32>
    %20 = arith.maximumf %18, %19 : vector<8x128xf32>
    %21 = arith.truncf %20 : vector<8x128xf32> to vector<8x128xbf16>
    %c0_17 = arith.constant 0 : index
    %c0_18 = arith.constant 0 : index
    %c0_19 = arith.constant 0 : index
    %22 = vector.load %arg6[%c0_17, %c0_18, %c0_19] : memref<1x128x128xbf16, #tpu.memory_space<vmem>>, vector<1x128x128xbf16>
    %23 = vector.shape_cast %22 : vector<1x128x128xbf16> to vector<128x128xbf16>
    %cst_20 = arith.constant dense<0.000000e+00> : vector<8x128xf32>
    %24 = tpu.matmul %21, %23, %cst_20 {dimension_numbers = #tpu.dot_dimension_numbers<[1], [0], [0], [1], [0, 0, 1, 1], [], []>} : vector<8x128xbf16>, vector<128x128xbf16>, vector<8x128xf32> -> vector<8x128xf32>
    %c0_21 = arith.constant 0 : index
    %c0_22 = arith.constant 0 : index
    %c0_23 = arith.constant 0 : index
    %25 = vector.load %arg7[%c0_21, %c0_22, %c0_23] : memref<1x1x128xf32, #tpu.memory_space<vmem>>, vector<1x1x128xf32>
    %26 = vector.shape_cast %25 : vector<1x1x128xf32> to vector<1x128xf32>
    %27 = vector.broadcast %26 : vector<1x128xf32> to vector<8x128xf32>
    %28 = arith.addf %24, %27 : vector<8x128xf32>
    %c0_24 = arith.constant 0 : index
    %c0_25 = arith.constant 0 : index
    %c0_26 = arith.constant 0 : index
    %29 = vector.load %arg8[%c0_24, %c0_25, %c0_26] : memref<1x8x128xf32, #tpu.memory_space<vmem>>, vector<1x8x128xf32>
    %30 = vector.shape_cast %29 : vector<1x8x128xf32> to vector<8x128xf32>
    %31 = vector.shape_cast %28 : vector<8x128xf32> to vector<1x8x128xf32>
    tpu.vector_store %arg8[%c0_24, %c0_25, %c0_26], %31 {strides = array<i32>} : memref<1x8x128xf32, #tpu.memory_space<vmem>>, vector<1x8x128xf32>,
    return
  }
  func.func @transform_0(%arg0: i32) -> (i32, i32, i32) {
    %c0_i32 = arith.constant 0 : i32
    %c0_i32_0 = arith.constant 0 : i32
    %c0_i32_1 = arith.constant 0 : i32
    return %arg0, %c0_i32, %c0_i32_0 : i32, i32, i32
  }
  func.func @transform_1(%arg0: i32) -> (i32, i32, i32) {
    %c0_i32 = arith.constant 0 : i32
    %c0_i32_0 = arith.constant 0 : i32
    %c0_i32_1 = arith.constant 0 : i32
    return %arg0, %c0_i32, %c0_i32_0 : i32, i32, i32
  }
  func.func @transform_2(%arg0: i32) -> (i32, i32, i32) {
    %c0_i32 = arith.constant 0 : i32
    %c0_i32_0 = arith.constant 0 : i32
    %c0_i32_1 = arith.constant 0 : i32
    return %arg0, %c0_i32, %c0_i32_0 : i32, i32, i32
  }
  func.func @transform_3(%arg0: i32) -> (i32, i32, i32) {
    %c0_i32 = arith.constant 0 : i32
    %c0_i32_0 = arith.constant 0 : i32
    %c0_i32_1 = arith.constant 0 : i32
    return %arg0, %c0_i32, %c0_i32_0 : i32, i32, i32
  }
  func.func @transform_4(%arg0: i32) -> (i32, i32, i32) {
    %c0_i32 = arith.constant 0 : i32
    %c0_i32_0 = arith.constant 0 : i32
    %c0_i32_1 = arith.constant 0 : i32
    return %arg0, %c0_i32, %c0_i32_0 : i32, i32, i32
  }
  func.func @transform_5(%arg0: i32) -> (i32, i32, i32) {
    %c0_i32 = arith.constant 0 : i32
    %c0_i32_0 = arith.constant 0 : i32
    %c0_i32_1 = arith.constant 0 : i32
    return %arg0, %c0_i32, %c0_i32_0 : i32, i32, i32
  }
  func.func @transform_6(%arg0: i32) -> (i32, i32, i32) {
    %c0_i32 = arith.constant 0 : i32
    %c0_i32_0 = arith.constant 0 : i32
    %c0_i32_1 = arith.constant 0 : i32
    return %arg0, %c0_i32, %c0_i32_0 : i32, i32, i32
  }
  func.func @transform_7(%arg0: i32) -> (i32, i32, i32) {
    %c0_i32 = arith.constant 0 : i32
    %c0_i32_0 = arith.constant 0 : i32
    %c0_i32_1 = arith.constant 0 : i32
    return %arg0, %c0_i32, %c0_i32_0 : i32, i32, i32
  }
}

</mosaic_0001>

<llo_original>
// kernel: sage_forward.4
$region0: #{sage_forward.4}
  #allocation0 [shape = 'u32[]', space=smem, size = 0x4, offset = 0x4, fixed_abs, tag = 'smem constant byte address 0x4 - core index']
  #allocation1 [shape = 'u32[144,128]{1,0:T(1,128)}', space=vmem, size = 0x12000, scoped, tag = 'internal scratch']
  %s0 = inlined_call_operand.vmem [shape: bf16[16,128], index: 0, kind: input, shape index: {}]
  %s1 = inlined_call_operand.vmem [shape: bf16[128,128], index: 1, kind: input, shape index: {}]
  %s2 = inlined_call_operand.vmem [shape: f32[1,128], index: 2, kind: input, shape index: {}]
  %s3 = inlined_call_operand.vmem [shape: bf16[16,128], index: 3, kind: output, shape index: {}]
  %s4 = sld [smem:[#allocation0]]
  $region22: #{sage_forward.4} parent=0
    _
  %s6 = ssub.s32 1, %s4
  %s7 = scalar_select 0, %s6, %s4
  // Predicated region
  $region2: #{sage_forward.4} parent=0 // pred_check
    _
  $region3: #{sage_forward.4} parent=0 // pred_check_branch
    %9 = sbr.rel (0) target = $region5
  $region4: #{sage_forward.4} parent=0 // pred_region
    _
  $region5: #{sage_forward.4} parent=0 // pred_fallthru
    _
  // Predicated region
  $region6: #{sage_forward.4} parent=0 // pred_check
    _
  $region7: #{sage_forward.4} parent=0 // pred_check_branch
    %11 = sbr.rel (0) target = $region9
  $region8: #{sage_forward.4} parent=0 // pred_region
    _
  $region9: #{sage_forward.4} parent=0 // pred_fallthru
    _
  // Predicated region
  $region10: #{sage_forward.4} parent=0 // pred_check
    _
  $region11: #{sage_forward.4} parent=0 // pred_check_branch
    %13 = sbr.rel (0) target = $region13
  $region12: #{sage_forward.4} parent=0 // pred_region
    _
  $region13: #{sage_forward.4} parent=0 // pred_fallthru
    _
  %v15 = vld [vmem:[%s0] sm:$0xf]
  %v16 = vld [vmem:[%s0 + $0x4] sm:$0xf]
  %v17 = vld [vmem:[%s1] sm:$0xf]
  %v18 = vld [vmem:[%s1 + $0x4] sm:$0xf]
  %v19 = vld [vmem:[%s1 + $0x8] sm:$0xf]
  %v20 = vld [vmem:[%s1 + $0xc] sm:$0xf]
  %v21 = vld [vmem:[%s1 + $0x10] sm:$0xf]
  %v22 = vld [vmem:[%s1 + $0x14] sm:$0xf]
  %v23 = vld [vmem:[%s1 + $0x18] sm:$0xf]
  %v24 = vld [vmem:[%s1 + $0x1c] sm:$0xf]
  %v25 = vld [vmem:[%s1 + $0x20] sm:$0xf]
  %v26 = vld [vmem:[%s1 + $0x24] sm:$0xf]
  %v27 = vld [vmem:[%s1 + $0x28] sm:$0xf]
  %v28 = vld [vmem:[%s1 + $0x2c] sm:$0xf]
  %v29 = vld [vmem:[%s1 + $0x30] sm:$0xf]
  %v30 = vld [vmem:[%s1 + $0x34] sm:$0xf]
  %v31 = vld [vmem:[%s1 + $0x38] sm:$0xf]
  %v32 = vld [vmem:[%s1 + $0x3c] sm:$0xf]
  %v33 = vld [vmem:[%s2] sm:$0x1]
  %v35 = vlaneseq
  %v36 = vshrl.u32 %v35, 7
  %v37 = vsub.s32 0, %v36
  %v38 = vrot.slane %v33, %v37
  %v42 = vunpack.c.l.b16 %v15
  %v43 = vunpack.c.l.b16 %v16
  %v44 = vpack.c.b16 %v43, %v42
  %v62 = vunpack.c.l.b16 %v17
  %v63 = vunpack.c.l.b16 %v18
  %v64 = vunpack.c.l.b16 %v19
  %v65 = vunpack.c.l.b16 %v20
  %v66 = vunpack.c.l.b16 %v21
  %v67 = vunpack.c.l.b16 %v22
  %v68 = vunpack.c.l.b16 %v23
  %v69 = vunpack.c.l.b16 %v24
  %v70 = vunpack.c.l.b16 %v25
  %v71 = vunpack.c.l.b16 %v26
  %v72 = vunpack.c.l.b16 %v27
  %v73 = vunpack.c.l.b16 %v28
  %v74 = vunpack.c.l.b16 %v29
  %v75 = vunpack.c.l.b16 %v30
  %v76 = vunpack.c.l.b16 %v31
  %v77 = vunpack.c.l.b16 %v32
  %v78 = vpack.c.b16 %v63, %v62
  %v79 = vpack.c.b16 %v65, %v64
  %v80 = vpack.c.b16 %v67, %v66
  %v81 = vpack.c.b16 %v69, %v68
  %v82 = vpack.c.b16 %v71, %v70
  %v83 = vpack.c.b16 %v73, %v72
  %v84 = vpack.c.b16 %v75, %v74
  %v85 = vpack.c.b16 %v77, %v76
  %94 = vmatprep.subr.bf16.mxu0 0
  %95 = vmatpush1.bf16.msra.mxu0 %v85
  %96 = vmatprep.subr.bf16.mxu0 0
  %97 = vmatpush1.bf16.msra.mxu0 %v84
  %98 = vmatprep.subr.bf16.mxu0 0
  %99 = vmatpush1.bf16.msra.mxu0 %v83
  %100 = vmatprep.subr.bf16.mxu0 0
  %101 = vmatpush1.bf16.msra.mxu0 %v82
  %102 = vmatprep.subr.bf16.mxu0 0
  %103 = vmatpush1.bf16.msra.mxu0 %v81
  %104 = vmatprep.subr.bf16.mxu0 0
  %105 = vmatpush1.bf16.msra.mxu0 %v80
  %106 = vmatprep.subr.bf16.mxu0 0
  %107 = vmatpush1.bf16.msra.mxu0 %v79
  %108 = vmatprep.subr.bf16.mxu0 0
  %109 = vmatpush1.bf16.msra.mxu0 %v78
  %110 = vmatprep.subr.bf16.mxu0 0
  %111 = vmatpush2.bf16.msra.mxu0 0
  %112 = vmatprep.subr.bf16.mxu0 0
  %113 = vmatpush2.bf16.msra.mxu0 0
  %114 = vmatprep.subr.bf16.mxu0 0
  %115 = vmatpush2.bf16.msra.mxu0 0
  %116 = vmatprep.subr.bf16.mxu0 0
  %117 = vmatpush2.bf16.msra.mxu0 0
  %118 = vmatprep.subr.bf16.mxu0 0
  %119 = vmatpush2.bf16.msra.mxu0 0
  %120 = vmatprep.subr.bf16.mxu0 0
  %121 = vmatpush2.bf16.msra.mxu0 0
  %122 = vmatprep.subr.bf16.mxu0 0
  %123 = vmatpush2.bf16.msra.mxu0 0
  %124 = vmatprep.subr.bf16.mxu0 0
  %125 = vmatpush2.bf16.msra.mxu0 0
  %126 = vmatprep.mubr.bf16.mxu0 0
  %127 = vmatmul.mubr.bf16.gmra.mxu0 %v44
  %v128 = vpop.f32.mrf.mxu0
  %v129 = vadd.f32 %v38, %v128
  %v130 = vpop.f32.mrf.mxu0
  %v131 = vpop.f32.mrf.mxu0
  %v132 = vadd.f32 %v38, %v131
  %v133 = vpop.f32.mrf.mxu0
  %134 = vdwg.mxu0
  %v135 = vpack.c.bf16 %v132, %v129
  %v137 = vunpack.c.l.b16 %v135
  %v138 = vunpack.c.h.b16 %v135
  %v139 = vpack.c.b16 %v137, %v137
  %v140 = vpack.c.b16 %v138, %v138
  %143 = vst [vmem:[%s3] sm:$0xf] %v139
  %144 = vst [vmem:[%s3 + $0x4] sm:$0xf] %v140
  // Predicated region
  $region14: #{sage_forward.4} parent=0 // pred_check
    _
  $region15: #{sage_forward.4} parent=0 // pred_check_branch
    %146 = sbr.rel (0) target = $region17
  $region16: #{sage_forward.4} parent=0 // pred_region
    _
  $region17: #{sage_forward.4} parent=0 // pred_fallthru
    _
  // Predicated region
  $region18: #{sage_forward.4} parent=0 // pred_check
    _
  $region19: #{sage_forward.4} parent=0 // pred_check_branch
    %148 = sbr.rel (0) target = $region21
  $region20: #{sage_forward.4} parent=0 // pred_region
    _
  $region21: #{sage_forward.4} parent=0 // pred_fallthru
    _

// kernel: sage_forward.5
$region0: #{sage_forward.5}
  #allocation0 [shape = 'u32[]', space=smem, size = 0x4, offset = 0x4, fixed_abs, tag = 'smem constant byte address 0x4 - core index']
  #allocation1 [shape = 'u32[144,128]{1,0:T(1,128)}', space=vmem, size = 0x12000, scoped, tag = 'internal scratch']
  %s0 = inlined_call_operand.vmem [shape: bf16[16,16], index: 0, kind: input, shape index: {}]
  %s1 = inlined_call_operand.vmem [shape: bf16[16,128], index: 1, kind: input, shape index: {}]
  %s2 = inlined_call_operand.vmem [shape: bf16[8,16], index: 2, kind: input, shape index: {}]
  %s3 = inlined_call_operand.vmem [shape: bf16[128,128], index: 3, kind: input, shape index: {}]
  %s4 = inlined_call_operand.vmem [shape: bf16[128,128], index: 4, kind: input, shape index: {}]
  %s5 = inlined_call_operand.vmem [shape: f32[1,128], index: 5, kind: input, shape index: {}]
  %s6 = inlined_call_operand.vmem [shape: bf16[16,128], index: 6, kind: output, shape index: {0}]
  %s7 = inlined_call_operand.vmem [shape: f32[8,128], index: 7, kind: output, shape index: {1}]
  %8 = xla_tuple %s6, %s7
  %s9 = sld [smem:[#allocation0]]
  $region46: #{sage_forward.5} parent=0
    _
  %s11 = ssub.s32 1, %s9
  %s12 = scalar_select 0, %s11, %s9
  // Predicated region
  $region2: #{sage_forward.5} parent=0 // pred_check
    _
  $region3: #{sage_forward.5} parent=0 // pred_check_branch
    %14 = sbr.rel (0) target = $region5
  $region4: #{sage_forward.5} parent=0 // pred_region
    _
  $region5: #{sage_forward.5} parent=0 // pred_fallthru
    _
  // Predicated region
  $region6: #{sage_forward.5} parent=0 // pred_check
    _
  $region7: #{sage_forward.5} parent=0 // pred_check_branch
    %16 = sbr.rel (0) target = $region9
  $region8: #{sage_forward.5} parent=0 // pred_region
    _
  $region9: #{sage_forward.5} parent=0 // pred_fallthru
    _
  // Predicated region
  $region10: #{sage_forward.5} parent=0 // pred_check
    _
  $region11: #{sage_forward.5} parent=0 // pred_check_branch
    %18 = sbr.rel (0) target = $region13
  $region12: #{sage_forward.5} parent=0 // pred_region
    _
  $region13: #{sage_forward.5} parent=0 // pred_fallthru
    _
  // Predicated region
  $region14: #{sage_forward.5} parent=0 // pred_check
    _
  $region15: #{sage_forward.5} parent=0 // pred_check_branch
    %20 = sbr.rel (0) target = $region17
  $region16: #{sage_forward.5} parent=0 // pred_region
    _
  $region17: #{sage_forward.5} parent=0 // pred_fallthru
    _
  // Predicated region
  $region18: #{sage_forward.5} parent=0 // pred_check
    _
  $region19: #{sage_forward.5} parent=0 // pred_check_branch
    %22 = sbr.rel (0) target = $region21
  $region20: #{sage_forward.5} parent=0 // pred_region
    _
  $region21: #{sage_forward.5} parent=0 // pred_fallthru
    _
  // Predicated region
  $region22: #{sage_forward.5} parent=0 // pred_check
    _
  $region23: #{sage_forward.5} parent=0 // pred_check_branch
    %24 = sbr.rel (0) target = $region25
  $region24: #{sage_forward.5} parent=0 // pred_region
    _
  $region25: #{sage_forward.5} parent=0 // pred_fallthru
    _
  %v26 = vld [vmem:[%s0] sm:$0xf]
  %v27 = vld [vmem:[%s0 + $0x4] sm:$0xf]
  %v28 = vld [vmem:[%s1] sm:$0xf]
  %v29 = vld [vmem:[%s1 + $0x4] sm:$0xf]
  %v32 = vunpack.c.l.b16 %v26
  %v33 = vunpack.c.l.b16 %v27
  %v34 = vpack.c.b16 %v33, %v32
  %v37 = vunpack.c.l.b16 %v28
  %v38 = vunpack.c.l.b16 %v29
  %v39 = vpack.c.b16 %v38, %v37
  %vm41 = vcmask 130048
  %v43 = vsel %vm41, %v34, 0
  %45 = vmatprep.subr.bf16.mxu0 0
  %46 = vmatpush1.bf16.msra.mxu0 0
  %47 = vmatprep.subr.bf16.mxu0 0
  %48 = vmatpush1.bf16.msra.mxu0 0
  %49 = vmatprep.subr.bf16.mxu0 0
  %50 = vmatpush1.bf16.msra.mxu0 0
  %51 = vmatprep.subr.bf16.mxu0 0
  %52 = vmatpush1.bf16.msra.mxu0 0
  %53 = vmatprep.subr.bf16.mxu0 0
  %54 = vmatpush1.bf16.msra.mxu0 0
  %55 = vmatprep.subr.bf16.mxu0 0
  %56 = vmatpush1.bf16.msra.mxu0 0
  %57 = vmatprep.subr.bf16.mxu0 0
  %58 = vmatpush1.bf16.msra.mxu0 0
  %59 = vmatprep.subr.bf16.mxu0 0
  %60 = vmatpush1.bf16.msra.mxu0 %v39
  %61 = vmatprep.subr.bf16.mxu0 0
  %62 = vmatpush2.bf16.msra.mxu0 0
  %63 = vmatprep.subr.bf16.mxu0 0
  %64 = vmatpush2.bf16.msra.mxu0 0
  %65 = vmatprep.subr.bf16.mxu0 0
  %66 = vmatpush2.bf16.msra.mxu0 0
  %67 = vmatprep.subr.bf16.mxu0 0
  %68 = vmatpush2.bf16.msra.mxu0 0
  %69 = vmatprep.subr.bf16.mxu0 0
  %70 = vmatpush2.bf16.msra.mxu0 0
  %71 = vmatprep.subr.bf16.mxu0 0
  %72 = vmatpush2.bf16.msra.mxu0 0
  %73 = vmatprep.subr.bf16.mxu0 0
  %74 = vmatpush2.bf16.msra.mxu0 0
  %75 = vmatprep.subr.bf16.mxu0 0
  %76 = vmatpush2.bf16.msra.mxu0 0
  %77 = vmatprep.mubr.bf16.mxu0 0
  %78 = vmatmul.mubr.bf16.gmra.mxu0 %v43
  %v79 = vpop.f32.mrf.mxu0
  %v80 = vadd.f32 0.0, %v79
  %v81 = vpop.f32.mrf.mxu0
  %v82 = vpop.f32.mrf.mxu0
  %v83 = vadd.f32 0.0, %v82
  %v84 = vpop.f32.mrf.mxu0
  %85 = vdwg.mxu0
  %s86 = smul.u32 0, 16
  %s87 = sshra.s32 %s86, 3
  %s88 = sand.u32 %s86, 7
  %s89 = smul.addr %s87, 4
  %s90 = scalar_lea.vmem %s1, %s89
  %v91 = vld [vmem:[%s90] sm:$0xf]
  %v92 = vld [vmem:[%s90 + $0x4] sm:$0xf]
  %v93 = vld [vmem:[%s3] sm:$0xf]
  %v94 = vld [vmem:[%s3 + $0x4] sm:$0xf]
  %v95 = vld [vmem:[%s3 + $0x8] sm:$0xf]
  %v96 = vld [vmem:[%s3 + $0xc] sm:$0xf]
  %v97 = vld [vmem:[%s3 + $0x10] sm:$0xf]
  %v98 = vld [vmem:[%s3 + $0x14] sm:$0xf]
  %v99 = vld [vmem:[%s3 + $0x18] sm:$0xf]
  %v100 = vld [vmem:[%s3 + $0x1c] sm:$0xf]
  %v101 = vld [vmem:[%s3 + $0x20] sm:$0xf]
  %v102 = vld [vmem:[%s3 + $0x24] sm:$0xf]
  %v103 = vld [vmem:[%s3 + $0x28] sm:$0xf]
  %v104 = vld [vmem:[%s3 + $0x2c] sm:$0xf]
  %v105 = vld [vmem:[%s3 + $0x30] sm:$0xf]
  %v106 = vld [vmem:[%s3 + $0x34] sm:$0xf]
  %v107 = vld [vmem:[%s3 + $0x38] sm:$0xf]
  %v108 = vld [vmem:[%s3 + $0x3c] sm:$0xf]
  %v109 = vpack.c.bf16 %v83, %v80
  %v110 = vld [vmem:[%s4] sm:$0xf]
  %v111 = vld [vmem:[%s4 + $0x4] sm:$0xf]
  %v112 = vld [vmem:[%s4 + $0x8] sm:$0xf]
  %v113 = vld [vmem:[%s4 + $0xc] sm:$0xf]
  %v114 = vld [vmem:[%s4 + $0x10] sm:$0xf]
  %v115 = vld [vmem:[%s4 + $0x14] sm:$0xf]
  %v116 = vld [vmem:[%s4 + $0x18] sm:$0xf]
  %v117 = vld [vmem:[%s4 + $0x1c] sm:$0xf]
  %v118 = vld [vmem:[%s4 + $0x20] sm:$0xf]
  %v119 = vld [vmem:[%s4 + $0x24] sm:$0xf]
  %v120 = vld [vmem:[%s4 + $0x28] sm:$0xf]
  %v121 = vld [vmem:[%s4 + $0x2c] sm:$0xf]
  %v122 = vld [vmem:[%s4 + $0x30] sm:$0xf]
  %v123 = vld [vmem:[%s4 + $0x34] sm:$0xf]
  %v124 = vld [vmem:[%s4 + $0x38] sm:$0xf]
  %v125 = vld [vmem:[%s4 + $0x3c] sm:$0xf]
  %v142 = vunpack.c.l.b16 %v110
  %v143 = vunpack.c.l.b16 %v111
  %v144 = vunpack.c.l.b16 %v112
  %v145 = vunpack.c.l.b16 %v113
  %v146 = vunpack.c.l.b16 %v114
  %v147 = vunpack.c.l.b16 %v115
  %v148 = vunpack.c.l.b16 %v116
  %v149 = vunpack.c.l.b16 %v117
  %v150 = vunpack.c.l.b16 %v118
  %v151 = vunpack.c.l.b16 %v119
  %v152 = vunpack.c.l.b16 %v120
  %v153 = vunpack.c.l.b16 %v121
  %v154 = vunpack.c.l.b16 %v122
  %v155 = vunpack.c.l.b16 %v123
  %v156 = vunpack.c.l.b16 %v124
  %v157 = vunpack.c.l.b16 %v125
  %v158 = vpack.c.b16 %v143, %v142
  %v159 = vpack.c.b16 %v145, %v144
  %v160 = vpack.c.b16 %v147, %v146
  %v161 = vpack.c.b16 %v149, %v148
  %v162 = vpack.c.b16 %v151, %v150
  %v163 = vpack.c.b16 %v153, %v152
  %v164 = vpack.c.b16 %v155, %v154
  %v165 = vpack.c.b16 %v157, %v156
  %174 = vmatprep.subr.bf16.mxu0 0
  %175 = vmatpush1.bf16.msra.mxu0 %v165
  %176 = vmatprep.subr.bf16.mxu0 0
  %177 = vmatpush1.bf16.msra.mxu0 %v164
  %178 = vmatprep.subr.bf16.mxu0 0
  %179 = vmatpush1.bf16.msra.mxu0 %v163
  %180 = vmatprep.subr.bf16.mxu0 0
  %181 = vmatpush1.bf16.msra.mxu0 %v162
  %182 = vmatprep.subr.bf16.mxu0 0
  %183 = vmatpush1.bf16.msra.mxu0 %v161
  %184 = vmatprep.subr.bf16.mxu0 0
  %185 = vmatpush1.bf16.msra.mxu0 %v160
  %186 = vmatprep.subr.bf16.mxu0 0
  %187 = vmatpush1.bf16.msra.mxu0 %v159
  %188 = vmatprep.subr.bf16.mxu0 0
  %189 = vmatpush1.bf16.msra.mxu0 %v158
  %190 = vmatprep.subr.bf16.mxu0 0
  %191 = vmatpush2.bf16.msra.mxu0 0
  %192 = vmatprep.subr.bf16.mxu0 0
  %193 = vmatpush2.bf16.msra.mxu0 0
  %194 = vmatprep.subr.bf16.mxu0 0
  %195 = vmatpush2.bf16.msra.mxu0 0
  %196 = vmatprep.subr.bf16.mxu0 0
  %197 = vmatpush2.bf16.msra.mxu0 0
  %198 = vmatprep.subr.bf16.mxu0 0
  %199 = vmatpush2.bf16.msra.mxu0 0
  %200 = vmatprep.subr.bf16.mxu0 0
  %201 = vmatpush2.bf16.msra.mxu0 0
  %202 = vmatprep.subr.bf16.mxu0 0
  %203 = vmatpush2.bf16.msra.mxu0 0
  %204 = vmatprep.subr.bf16.mxu0 0
  %205 = vmatpush2.bf16.msra.mxu0 0
  %206 = vmatprep.mubr.bf16.mxu0 0
  %207 = vmatmul.mubr.bf16.gmra.mxu0 %v109
  %v208 = vpop.f32.mrf.mxu0
  %v209 = vadd.f32 0.0, %v208
  %v210 = vpop.f32.mrf.mxu0
  %v211 = vpop.f32.mrf.mxu0
  %v212 = vadd.f32 0.0, %v211
  %v213 = vpop.f32.mrf.mxu0
  %214 = vdwg.mxu0
  %v217 = vunpack.c.l.b16 %v91
  %v218 = vunpack.c.l.b16 %v92
  %v219 = vpack.c.b16 %v218, %v217
  %v237 = vunpack.c.l.b16 %v93
  %v238 = vunpack.c.l.b16 %v94
  %v239 = vunpack.c.l.b16 %v95
  %v240 = vunpack.c.l.b16 %v96
  %v241 = vunpack.c.l.b16 %v97
  %v242 = vunpack.c.l.b16 %v98
  %v243 = vunpack.c.l.b16 %v99
  %v244 = vunpack.c.l.b16 %v100
  %v245 = vunpack.c.l.b16 %v101
  %v246 = vunpack.c.l.b16 %v102
  %v247 = vunpack.c.l.b16 %v103
  %v248 = vunpack.c.l.b16 %v104
  %v249 = vunpack.c.l.b16 %v105
  %v250 = vunpack.c.l.b16 %v106
  %v251 = vunpack.c.l.b16 %v107
  %v252 = vunpack.c.l.b16 %v108
  %v253 = vpack.c.b16 %v238, %v237
  %v254 = vpack.c.b16 %v240, %v239
  %v255 = vpack.c.b16 %v242, %v241
  %v256 = vpack.c.b16 %v244, %v243
  %v257 = vpack.c.b16 %v246, %v245
  %v258 = vpack.c.b16 %v248, %v247
  %v259 = vpack.c.b16 %v250, %v249
  %v260 = vpack.c.b16 %v252, %v251
  %269 = vmatprep.subr.bf16.mxu0 0
  %270 = vmatpush1.bf16.msra.mxu0 %v260
  %271 = vmatprep.subr.bf16.mxu0 0
  %272 = vmatpush1.bf16.msra.mxu0 %v259
  %273 = vmatprep.subr.bf16.mxu0 0
  %274 = vmatpush1.bf16.msra.mxu0 %v258
  %275 = vmatprep.subr.bf16.mxu0 0
  %276 = vmatpush1.bf16.msra.mxu0 %v257
  %277 = vmatprep.subr.bf16.mxu0 0
  %278 = vmatpush1.bf16.msra.mxu0 %v256
  %279 = vmatprep.subr.bf16.mxu0 0
  %280 = vmatpush1.bf16.msra.mxu0 %v255
  %281 = vmatprep.subr.bf16.mxu0 0
  %282 = vmatpush1.bf16.msra.mxu0 %v254
  %283 = vmatprep.subr.bf16.mxu0 0
  %284 = vmatpush1.bf16.msra.mxu0 %v253
  %285 = vmatprep.subr.bf16.mxu0 0
  %286 = vmatpush2.bf16.msra.mxu0 0
  %287 = vmatprep.subr.bf16.mxu0 0
  %288 = vmatpush2.bf16.msra.mxu0 0
  %289 = vmatprep.subr.bf16.mxu0 0
  %290 = vmatpush2.bf16.msra.mxu0 0
  %291 = vmatprep.subr.bf16.mxu0 0
  %292 = vmatpush2.bf16.msra.mxu0 0
  %293 = vmatprep.subr.bf16.mxu0 0
  %294 = vmatpush2.bf16.msra.mxu0 0
  %295 = vmatprep.subr.bf16.mxu0 0
  %296 = vmatpush2.bf16.msra.mxu0 0
  %297 = vmatprep.subr.bf16.mxu0 0
  %298 = vmatpush2.bf16.msra.mxu0 0
  %299 = vmatprep.subr.bf16.mxu0 0
  %300 = vmatpush2.bf16.msra.mxu0 0
  %301 = vmatprep.mubr.bf16.mxu0 0
  %302 = vmatmul.mubr.bf16.gmra.mxu0 %v219
  %v303 = vpop.f32.mrf.mxu0
  %v304 = vadd.f32 %v209, %v303
  %v305 = vpop.f32.mrf.mxu0
  %v306 = vpop.f32.mrf.mxu0
  %v307 = vadd.f32 %v212, %v306
  %v308 = vpop.f32.mrf.mxu0
  %309 = vdwg.mxu0
  %v310 = vld [vmem:[%s5] sm:$0x1]
  %v312 = vlaneseq
  %v313 = vshrl.u32 %v312, 7
  %v314 = vsub.s32 0, %v313
  %v315 = vrot.slane %v310, %v314
  %v317 = vadd.f32 %v304, %v315
  %v318 = vadd.f32 %v307, %v315
  %v319 = vmax.f32 %v317, 0.0
  %v320 = vmax.f32 %v318, 0.0
  %v321 = vunpack.c.l.bf16 %v91
  %v322 = vunpack.c.l.bf16 %v92
  %v323 = vadd.f32 %v319, %v321
  %v324 = vadd.f32 %v320, %v322
  %v325 = vpack.c.bf16 %v324, %v323
  %v327 = vunpack.c.l.b16 %v325
  %v328 = vunpack.c.h.b16 %v325
  %v329 = vpack.c.b16 %v327, %v327
  %v330 = vpack.c.b16 %v328, %v328
  %333 = vst [vmem:[%s6] sm:$0xf] %v329
  %334 = vst [vmem:[%s6 + $0x4] sm:$0xf] %v330
  %p335 = scmp.eq.s32.totalorder 0, 0
  // Predicated region
  $region26: #{sage_forward.5} parent=0 // pred_check
    %p336 = pneg %p335
  $region27: #{sage_forward.5} parent=0 // pred_check_branch
    %338 = sbr.rel (%p336) target = $region29
  $region28: #{sage_forward.5} parent=0 // pred_region
    %339 = vst [vmem:[%s7] sm:$0xff] 0.0
  $region29: #{sage_forward.5} parent=0 // pred_fallthru
    _
  %v340 = vld [vmem:[%s7] sm:$0xff]
  %v341 = vld [vmem:[%s2] sm:$0xf]
  %v343 = vsel %vm41, %v341, 0
  %345 = vmatprep.subr.bf16.mxu0 0
  %346 = vmatpush1.bf16.msra.mxu0 0
  %347 = vmatprep.subr.bf16.mxu0 0
  %348 = vmatpush1.bf16.msra.mxu0 0
  %349 = vmatprep.subr.bf16.mxu0 0
  %350 = vmatpush1.bf16.msra.mxu0 0
  %351 = vmatprep.subr.bf16.mxu0 0
  %352 = vmatpush1.bf16.msra.mxu0 0
  %353 = vmatprep.subr.bf16.mxu0 0
  %354 = vmatpush1.bf16.msra.mxu0 0
  %355 = vmatprep.subr.bf16.mxu0 0
  %356 = vmatpush1.bf16.msra.mxu0 0
  %357 = vmatprep.subr.bf16.mxu0 0
  %358 = vmatpush1.bf16.msra.mxu0 0
  %359 = vmatprep.subr.bf16.mxu0 0
  %360 = vmatpush1.bf16.msra.mxu0 %v325
  %361 = vmatprep.subr.bf16.mxu0 0
  %362 = vmatpush2.bf16.msra.mxu0 0
  %363 = vmatprep.subr.bf16.mxu0 0
  %364 = vmatpush2.bf16.msra.mxu0 0
  %365 = vmatprep.subr.bf16.mxu0 0
  %366 = vmatpush2.bf16.msra.mxu0 0
  %367 = vmatprep.subr.bf16.mxu0 0
  %368 = vmatpush2.bf16.msra.mxu0 0
  %369 = vmatprep.subr.bf16.mxu0 0
  %370 = vmatpush2.bf16.msra.mxu0 0
  %371 = vmatprep.subr.bf16.mxu0 0
  %372 = vmatpush2.bf16.msra.mxu0 0
  %373 = vmatprep.subr.bf16.mxu0 0
  %374 = vmatpush2.bf16.msra.mxu0 0
  %375 = vmatprep.subr.bf16.mxu0 0
  %376 = vmatpush2.bf16.msra.mxu0 0
  %377 = vmatprep.mubr.bf16.mxu0 0
  %378 = vmatmul.mubr.bf16.gmra.mxu0 %v343
  %v379 = vpop.f32.mrf.mxu0
  %v380 = vadd.f32 0.0, %v379
  %v381 = vpop.f32.mrf.mxu0
  %v382 = vpop.f32.mrf.mxu0
  %v383 = vpop.f32.mrf.mxu0
  %384 = vdwg.mxu0
  %v385 = vadd.f32 %v340, %v380
  %386 = vst [vmem:[%s7] sm:$0xff] %v385
  // Predicated region
  $region30: #{sage_forward.5} parent=0 // pred_check
    _
  $region31: #{sage_forward.5} parent=0 // pred_check_branch
    %388 = sbr.rel (0) target = $region33
  $region32: #{sage_forward.5} parent=0 // pred_region
    _
  $region33: #{sage_forward.5} parent=0 // pred_fallthru
    _
  // Predicated region
  $region34: #{sage_forward.5} parent=0 // pred_check
    _
  $region35: #{sage_forward.5} parent=0 // pred_check_branch
    %390 = sbr.rel (0) target = $region37
  $region36: #{sage_forward.5} parent=0 // pred_region
    _
  $region37: #{sage_forward.5} parent=0 // pred_fallthru
    _
  // Predicated region
  $region38: #{sage_forward.5} parent=0 // pred_check
    _
  $region39: #{sage_forward.5} parent=0 // pred_check_branch
    %392 = sbr.rel (0) target = $region41
  $region40: #{sage_forward.5} parent=0 // pred_region
    _
  $region41: #{sage_forward.5} parent=0 // pred_fallthru
    _
  // Predicated region
  $region42: #{sage_forward.5} parent=0 // pred_check
    _
  $region43: #{sage_forward.5} parent=0 // pred_check_branch
    %394 = sbr.rel (0) target = $region45
  $region44: #{sage_forward.5} parent=0 // pred_region
    _
  $region45: #{sage_forward.5} parent=0 // pred_fallthru
    _

// kernel: sage_forward.6
$region0: #{sage_forward.6}
  #allocation0 [shape = 'u32[]', space=smem, size = 0x4, offset = 0x4, fixed_abs, tag = 'smem constant byte address 0x4 - core index']
  #allocation1 [shape = 'u32[144,128]{1,0:T(1,128)}', space=vmem, size = 0x12000, scoped, tag = 'internal scratch']
  %s0 = inlined_call_operand.vmem [shape: bf16[16,16], index: 0, kind: input, shape index: {}]
  %s1 = inlined_call_operand.vmem [shape: bf16[16,128], index: 1, kind: input, shape index: {}]
  %s2 = inlined_call_operand.vmem [shape: bf16[8,16], index: 2, kind: input, shape index: {}]
  %s3 = inlined_call_operand.vmem [shape: bf16[128,128], index: 3, kind: input, shape index: {}]
  %s4 = inlined_call_operand.vmem [shape: bf16[128,128], index: 4, kind: input, shape index: {}]
  %s5 = inlined_call_operand.vmem [shape: f32[1,128], index: 5, kind: input, shape index: {}]
  %s6 = inlined_call_operand.hbm [shape: bf16[16,128], index: 6, kind: output, shape index: {0}]
  %s7 = inlined_call_operand.vmem [shape: f32[8,128], index: 7, kind: output, shape index: {1}]
  %8 = xla_tuple %s6, %s7
  %s9 = sld [smem:[#allocation0]]
  $region46: #{sage_forward.6} parent=0
    _
  %s11 = ssub.s32 1, %s9
  %s12 = scalar_select 0, %s11, %s9
  $region1: #{sage_forward.6} parent=0
    #allocation2 [shape = 'u8[4096]{0}', space=vmem, size = 0x1000, scoped, tag = 'output window, operand 0, single buffered']
    #allocation3 [shape = 's32[1]{0}', space=sflag, size = 0x4, scoped, tag = 'scoped memory for sage_forward.6']
    %13 = vsyncpa [#allocation3], 0
    // Predicated region
    $region2: #{sage_forward.6} parent=1 // pred_check
      _
    $region3: #{sage_forward.6} parent=1 // pred_check_branch
      %15 = sbr.rel (0) target = $region5
    $region4: #{sage_forward.6} parent=1 // pred_region
      _
    $region5: #{sage_forward.6} parent=1 // pred_fallthru
      _
    // Predicated region
    $region6: #{sage_forward.6} parent=1 // pred_check
      _
    $region7: #{sage_forward.6} parent=1 // pred_check_branch
      %17 = sbr.rel (0) target = $region9
    $region8: #{sage_forward.6} parent=1 // pred_region
      _
    $region9: #{sage_forward.6} parent=1 // pred_fallthru
      _
    // Predicated region
    $region10: #{sage_forward.6} parent=1 // pred_check
      _
    $region11: #{sage_forward.6} parent=1 // pred_check_branch
      %19 = sbr.rel (0) target = $region13
    $region12: #{sage_forward.6} parent=1 // pred_region
      _
    $region13: #{sage_forward.6} parent=1 // pred_fallthru
      _
    // Predicated region
    $region14: #{sage_forward.6} parent=1 // pred_check
      _
    $region15: #{sage_forward.6} parent=1 // pred_check_branch
      %21 = sbr.rel (0) target = $region17
    $region16: #{sage_forward.6} parent=1 // pred_region
      _
    $region17: #{sage_forward.6} parent=1 // pred_fallthru
      _
    // Predicated region
    $region18: #{sage_forward.6} parent=1 // pred_check
      _
    $region19: #{sage_forward.6} parent=1 // pred_check_branch
      %23 = sbr.rel (0) target = $region21
    $region20: #{sage_forward.6} parent=1 // pred_region
      _
    $region21: #{sage_forward.6} parent=1 // pred_fallthru
      _
    // Predicated region
    $region22: #{sage_forward.6} parent=1 // pred_check
      _
    $region23: #{sage_forward.6} parent=1 // pred_check_branch
      %25 = sbr.rel (0) target = $region25
    $region24: #{sage_forward.6} parent=1 // pred_region
      _
    $region25: #{sage_forward.6} parent=1 // pred_fallthru
      _
    %v27 = vld [vmem:[%s0] sm:$0xf]
    %v28 = vld [vmem:[%s0 + $0x4] sm:$0xf]
    %v29 = vld [vmem:[%s1] sm:$0xf]
    %v30 = vld [vmem:[%s1 + $0x4] sm:$0xf]
    %v33 = vunpack.c.l.b16 %v27
    %v34 = vunpack.c.l.b16 %v28
    %v35 = vpack.c.b16 %v34, %v33
    %v38 = vunpack.c.l.b16 %v29
    %v39 = vunpack.c.l.b16 %v30
    %v40 = vpack.c.b16 %v39, %v38
    %vm42 = vcmask 130048
    %v44 = vsel %vm42, %v35, 0
    %46 = vmatprep.subr.bf16.mxu0 0
    %47 = vmatpush1.bf16.msra.mxu0 0
    %48 = vmatprep.subr.bf16.mxu0 0
    %49 = vmatpush1.bf16.msra.mxu0 0
    %50 = vmatprep.subr.bf16.mxu0 0
    %51 = vmatpush1.bf16.msra.mxu0 0
    %52 = vmatprep.subr.bf16.mxu0 0
    %53 = vmatpush1.bf16.msra.mxu0 0
    %54 = vmatprep.subr.bf16.mxu0 0
    %55 = vmatpush1.bf16.msra.mxu0 0
    %56 = vmatprep.subr.bf16.mxu0 0
    %57 = vmatpush1.bf16.msra.mxu0 0
    %58 = vmatprep.subr.bf16.mxu0 0
    %59 = vmatpush1.bf16.msra.mxu0 0
    %60 = vmatprep.subr.bf16.mxu0 0
    %61 = vmatpush1.bf16.msra.mxu0 %v40
    %62 = vmatprep.subr.bf16.mxu0 0
    %63 = vmatpush2.bf16.msra.mxu0 0
    %64 = vmatprep.subr.bf16.mxu0 0
    %65 = vmatpush2.bf16.msra.mxu0 0
    %66 = vmatprep.subr.bf16.mxu0 0
    %67 = vmatpush2.bf16.msra.mxu0 0
    %68 = vmatprep.subr.bf16.mxu0 0
    %69 = vmatpush2.bf16.msra.mxu0 0
    %70 = vmatprep.subr.bf16.mxu0 0
    %71 = vmatpush2.bf16.msra.mxu0 0
    %72 = vmatprep.subr.bf16.mxu0 0
    %73 = vmatpush2.bf16.msra.mxu0 0
    %74 = vmatprep.subr.bf16.mxu0 0
    %75 = vmatpush2.bf16.msra.mxu0 0
    %76 = vmatprep.subr.bf16.mxu0 0
    %77 = vmatpush2.bf16.msra.mxu0 0
    %78 = vmatprep.mubr.bf16.mxu0 0
    %79 = vmatmul.mubr.bf16.gmra.mxu0 %v44
    %v80 = vpop.f32.mrf.mxu0
    %v81 = vadd.f32 0.0, %v80
    %v82 = vpop.f32.mrf.mxu0
    %v83 = vpop.f32.mrf.mxu0
    %v84 = vadd.f32 0.0, %v83
    %v85 = vpop.f32.mrf.mxu0
    %86 = vdwg.mxu0
    %s87 = smul.u32 0, 16
    %s88 = sshra.s32 %s87, 3
    %s89 = sand.u32 %s87, 7
    %s90 = smul.addr %s88, 4
    %s91 = scalar_lea.vmem %s1, %s90
    %v92 = vld [vmem:[%s91] sm:$0xf]
    %v93 = vld [vmem:[%s91 + $0x4] sm:$0xf]
    %v94 = vld [vmem:[%s3] sm:$0xf]
    %v95 = vld [vmem:[%s3 + $0x4] sm:$0xf]
    %v96 = vld [vmem:[%s3 + $0x8] sm:$0xf]
    %v97 = vld [vmem:[%s3 + $0xc] sm:$0xf]
    %v98 = vld [vmem:[%s3 + $0x10] sm:$0xf]
    %v99 = vld [vmem:[%s3 + $0x14] sm:$0xf]
    %v100 = vld [vmem:[%s3 + $0x18] sm:$0xf]
    %v101 = vld [vmem:[%s3 + $0x1c] sm:$0xf]
    %v102 = vld [vmem:[%s3 + $0x20] sm:$0xf]
    %v103 = vld [vmem:[%s3 + $0x24] sm:$0xf]
    %v104 = vld [vmem:[%s3 + $0x28] sm:$0xf]
    %v105 = vld [vmem:[%s3 + $0x2c] sm:$0xf]
    %v106 = vld [vmem:[%s3 + $0x30] sm:$0xf]
    %v107 = vld [vmem:[%s3 + $0x34] sm:$0xf]
    %v108 = vld [vmem:[%s3 + $0x38] sm:$0xf]
    %v109 = vld [vmem:[%s3 + $0x3c] sm:$0xf]
    %v110 = vpack.c.bf16 %v84, %v81
    %v111 = vld [vmem:[%s4] sm:$0xf]
    %v112 = vld [vmem:[%s4 + $0x4] sm:$0xf]
    %v113 = vld [vmem:[%s4 + $0x8] sm:$0xf]
    %v114 = vld [vmem:[%s4 + $0xc] sm:$0xf]
    %v115 = vld [vmem:[%s4 + $0x10] sm:$0xf]
    %v116 = vld [vmem:[%s4 + $0x14] sm:$0xf]
    %v117 = vld [vmem:[%s4 + $0x18] sm:$0xf]
    %v118 = vld [vmem:[%s4 + $0x1c] sm:$0xf]
    %v119 = vld [vmem:[%s4 + $0x20] sm:$0xf]
    %v120 = vld [vmem:[%s4 + $0x24] sm:$0xf]
    %v121 = vld [vmem:[%s4 + $0x28] sm:$0xf]
    %v122 = vld [vmem:[%s4 + $0x2c] sm:$0xf]
    %v123 = vld [vmem:[%s4 + $0x30] sm:$0xf]
    %v124 = vld [vmem:[%s4 + $0x34] sm:$0xf]
    %v125 = vld [vmem:[%s4 + $0x38] sm:$0xf]
    %v126 = vld [vmem:[%s4 + $0x3c] sm:$0xf]
    %v143 = vunpack.c.l.b16 %v111
    %v144 = vunpack.c.l.b16 %v112
    %v145 = vunpack.c.l.b16 %v113
    %v146 = vunpack.c.l.b16 %v114
    %v147 = vunpack.c.l.b16 %v115
    %v148 = vunpack.c.l.b16 %v116
    %v149 = vunpack.c.l.b16 %v117
    %v150 = vunpack.c.l.b16 %v118
    %v151 = vunpack.c.l.b16 %v119
    %v152 = vunpack.c.l.b16 %v120
    %v153 = vunpack.c.l.b16 %v121
    %v154 = vunpack.c.l.b16 %v122
    %v155 = vunpack.c.l.b16 %v123
    %v156 = vunpack.c.l.b16 %v124
    %v157 = vunpack.c.l.b16 %v125
    %v158 = vunpack.c.l.b16 %v126
    %v159 = vpack.c.b16 %v144, %v143
    %v160 = vpack.c.b16 %v146, %v145
    %v161 = vpack.c.b16 %v148, %v147
    %v162 = vpack.c.b16 %v150, %v149
    %v163 = vpack.c.b16 %v152, %v151
    %v164 = vpack.c.b16 %v154, %v153
    %v165 = vpack.c.b16 %v156, %v155
    %v166 = vpack.c.b16 %v158, %v157
    %175 = vmatprep.subr.bf16.mxu0 0
    %176 = vmatpush1.bf16.msra.mxu0 %v166
    %177 = vmatprep.subr.bf16.mxu0 0
    %178 = vmatpush1.bf16.msra.mxu0 %v165
    %179 = vmatprep.subr.bf16.mxu0 0
    %180 = vmatpush1.bf16.msra.mxu0 %v164
    %181 = vmatprep.subr.bf16.mxu0 0
    %182 = vmatpush1.bf16.msra.mxu0 %v163
    %183 = vmatprep.subr.bf16.mxu0 0
    %184 = vmatpush1.bf16.msra.mxu0 %v162
    %185 = vmatprep.subr.bf16.mxu0 0
    %186 = vmatpush1.bf16.msra.mxu0 %v161
    %187 = vmatprep.subr.bf16.mxu0 0
    %188 = vmatpush1.bf16.msra.mxu0 %v160
    %189 = vmatprep.subr.bf16.mxu0 0
    %190 = vmatpush1.bf16.msra.mxu0 %v159
    %191 = vmatprep.subr.bf16.mxu0 0
    %192 = vmatpush2.bf16.msra.mxu0 0
    %193 = vmatprep.subr.bf16.mxu0 0
    %194 = vmatpush2.bf16.msra.mxu0 0
    %195 = vmatprep.subr.bf16.mxu0 0
    %196 = vmatpush2.bf16.msra.mxu0 0
    %197 = vmatprep.subr.bf16.mxu0 0
    %198 = vmatpush2.bf16.msra.mxu0 0
    %199 = vmatprep.subr.bf16.mxu0 0
    %200 = vmatpush2.bf16.msra.mxu0 0
    %201 = vmatprep.subr.bf16.mxu0 0
    %202 = vmatpush2.bf16.msra.mxu0 0
    %203 = vmatprep.subr.bf16.mxu0 0
    %204 = vmatpush2.bf16.msra.mxu0 0
    %205 = vmatprep.subr.bf16.mxu0 0
    %206 = vmatpush2.bf16.msra.mxu0 0
    %207 = vmatprep.mubr.bf16.mxu0 0
    %208 = vmatmul.mubr.bf16.gmra.mxu0 %v110
    %v209 = vpop.f32.mrf.mxu0
    %v210 = vadd.f32 0.0, %v209
    %v211 = vpop.f32.mrf.mxu0
    %v212 = vpop.f32.mrf.mxu0
    %v213 = vadd.f32 0.0, %v212
    %v214 = vpop.f32.mrf.mxu0
    %215 = vdwg.mxu0
    %v218 = vunpack.c.l.b16 %v92
    %v219 = vunpack.c.l.b16 %v93
    %v220 = vpack.c.b16 %v219, %v218
    %v238 = vunpack.c.l.b16 %v94
    %v239 = vunpack.c.l.b16 %v95
    %v240 = vunpack.c.l.b16 %v96
    %v241 = vunpack.c.l.b16 %v97
    %v242 = vunpack.c.l.b16 %v98
    %v243 = vunpack.c.l.b16 %v99
    %v244 = vunpack.c.l.b16 %v100
    %v245 = vunpack.c.l.b16 %v101
    %v246 = vunpack.c.l.b16 %v102
    %v247 = vunpack.c.l.b16 %v103
    %v248 = vunpack.c.l.b16 %v104
    %v249 = vunpack.c.l.b16 %v105
    %v250 = vunpack.c.l.b16 %v106
    %v251 = vunpack.c.l.b16 %v107
    %v252 = vunpack.c.l.b16 %v108
    %v253 = vunpack.c.l.b16 %v109
    %v254 = vpack.c.b16 %v239, %v238
    %v255 = vpack.c.b16 %v241, %v240
    %v256 = vpack.c.b16 %v243, %v242
    %v257 = vpack.c.b16 %v245, %v244
    %v258 = vpack.c.b16 %v247, %v246
    %v259 = vpack.c.b16 %v249, %v248
    %v260 = vpack.c.b16 %v251, %v250
    %v261 = vpack.c.b16 %v253, %v252
    %270 = vmatprep.subr.bf16.mxu0 0
    %271 = vmatpush1.bf16.msra.mxu0 %v261
    %272 = vmatprep.subr.bf16.mxu0 0
    %273 = vmatpush1.bf16.msra.mxu0 %v260
    %274 = vmatprep.subr.bf16.mxu0 0
    %275 = vmatpush1.bf16.msra.mxu0 %v259
    %276 = vmatprep.subr.bf16.mxu0 0
    %277 = vmatpush1.bf16.msra.mxu0 %v258
    %278 = vmatprep.subr.bf16.mxu0 0
    %279 = vmatpush1.bf16.msra.mxu0 %v257
    %280 = vmatprep.subr.bf16.mxu0 0
    %281 = vmatpush1.bf16.msra.mxu0 %v256
    %282 = vmatprep.subr.bf16.mxu0 0
    %283 = vmatpush1.bf16.msra.mxu0 %v255
    %284 = vmatprep.subr.bf16.mxu0 0
    %285 = vmatpush1.bf16.msra.mxu0 %v254
    %286 = vmatprep.subr.bf16.mxu0 0
    %287 = vmatpush2.bf16.msra.mxu0 0
    %288 = vmatprep.subr.bf16.mxu0 0
    %289 = vmatpush2.bf16.msra.mxu0 0
    %290 = vmatprep.subr.bf16.mxu0 0
    %291 = vmatpush2.bf16.msra.mxu0 0
    %292 = vmatprep.subr.bf16.mxu0 0
    %293 = vmatpush2.bf16.msra.mxu0 0
    %294 = vmatprep.subr.bf16.mxu0 0
    %295 = vmatpush2.bf16.msra.mxu0 0
    %296 = vmatprep.subr.bf16.mxu0 0
    %297 = vmatpush2.bf16.msra.mxu0 0
    %298 = vmatprep.subr.bf16.mxu0 0
    %299 = vmatpush2.bf16.msra.mxu0 0
    %300 = vmatprep.subr.bf16.mxu0 0
    %301 = vmatpush2.bf16.msra.mxu0 0
    %302 = vmatprep.mubr.bf16.mxu0 0
    %303 = vmatmul.mubr.bf16.gmra.mxu0 %v220
    %v304 = vpop.f32.mrf.mxu0
    %v305 = vadd.f32 %v210, %v304
    %v306 = vpop.f32.mrf.mxu0
    %v307 = vpop.f32.mrf.mxu0
    %v308 = vadd.f32 %v213, %v307
    %v309 = vpop.f32.mrf.mxu0
    %310 = vdwg.mxu0
    %v311 = vld [vmem:[%s5] sm:$0x1]
    %v313 = vlaneseq
    %v314 = vshrl.u32 %v313, 7
    %v315 = vsub.s32 0, %v314
    %v316 = vrot.slane %v311, %v315
    %v318 = vadd.f32 %v305, %v316
    %v319 = vadd.f32 %v308, %v316
    %v320 = vmax.f32 %v318, 0.0
    %v321 = vmax.f32 %v319, 0.0
    %v322 = vunpack.c.l.bf16 %v92
    %v323 = vunpack.c.l.bf16 %v93
    %v324 = vadd.f32 %v320, %v322
    %v325 = vadd.f32 %v321, %v323
    %v326 = vpack.c.bf16 %v325, %v324
    %v328 = vunpack.c.l.b16 %v326
    %v329 = vunpack.c.h.b16 %v326
    %v330 = vpack.c.b16 %v328, %v328
    %v331 = vpack.c.b16 %v329, %v329
    %334 = vst [vmem:[#allocation2] sm:$0xf] %v330
    %335 = vst [vmem:[#allocation2 + $0x4] sm:$0xf] %v331
    %p336 = scmp.eq.s32.totalorder 0, 0
    // Predicated region
    $region26: #{sage_forward.6} parent=1 // pred_check
      %p337 = pneg %p336
    $region27: #{sage_forward.6} parent=1 // pred_check_branch
      %339 = sbr.rel (%p337) target = $region29
    $region28: #{sage_forward.6} parent=1 // pred_region
      %340 = vst [vmem:[%s7] sm:$0xff] 0.0
    $region29: #{sage_forward.6} parent=1 // pred_fallthru
      _
    %v341 = vld [vmem:[%s7] sm:$0xff]
    %v342 = vld [vmem:[%s2] sm:$0xf]
    %v344 = vsel %vm42, %v342, 0
    %346 = vmatprep.subr.bf16.mxu0 0
    %347 = vmatpush1.bf16.msra.mxu0 0
    %348 = vmatprep.subr.bf16.mxu0 0
    %349 = vmatpush1.bf16.msra.mxu0 0
    %350 = vmatprep.subr.bf16.mxu0 0
    %351 = vmatpush1.bf16.msra.mxu0 0
    %352 = vmatprep.subr.bf16.mxu0 0
    %353 = vmatpush1.bf16.msra.mxu0 0
    %354 = vmatprep.subr.bf16.mxu0 0
    %355 = vmatpush1.bf16.msra.mxu0 0
    %356 = vmatprep.subr.bf16.mxu0 0
    %357 = vmatpush1.bf16.msra.mxu0 0
    %358 = vmatprep.subr.bf16.mxu0 0
    %359 = vmatpush1.bf16.msra.mxu0 0
    %360 = vmatprep.subr.bf16.mxu0 0
    %361 = vmatpush1.bf16.msra.mxu0 %v326
    %362 = vmatprep.subr.bf16.mxu0 0
    %363 = vmatpush2.bf16.msra.mxu0 0
    %364 = vmatprep.subr.bf16.mxu0 0
    %365 = vmatpush2.bf16.msra.mxu0 0
    %366 = vmatprep.subr.bf16.mxu0 0
    %367 = vmatpush2.bf16.msra.mxu0 0
    %368 = vmatprep.subr.bf16.mxu0 0
    %369 = vmatpush2.bf16.msra.mxu0 0
    %370 = vmatprep.subr.bf16.mxu0 0
    %371 = vmatpush2.bf16.msra.mxu0 0
    %372 = vmatprep.subr.bf16.mxu0 0
    %373 = vmatpush2.bf16.msra.mxu0 0
    %374 = vmatprep.subr.bf16.mxu0 0
    %375 = vmatpush2.bf16.msra.mxu0 0
    %376 = vmatprep.subr.bf16.mxu0 0
    %377 = vmatpush2.bf16.msra.mxu0 0
    %378 = vmatprep.mubr.bf16.mxu0 0
    %379 = vmatmul.mubr.bf16.gmra.mxu0 %v344
    %v380 = vpop.f32.mrf.mxu0
    %v381 = vadd.f32 0.0, %v380
    %v382 = vpop.f32.mrf.mxu0
    %v383 = vpop.f32.mrf.mxu0
    %v384 = vpop.f32.mrf.mxu0
    %385 = vdwg.mxu0
    %v386 = vadd.f32 %v341, %v381
    %387 = vst [vmem:[%s7] sm:$0xff] %v386
    // Predicated region
    $region30: #{sage_forward.6} parent=1 // pred_check
      _
    $region31: #{sage_forward.6} parent=1 // pred_check_branch
      %389 = sbr.rel (0) target = $region33
    $region32: #{sage_forward.6} parent=1 // pred_region
      %s391 = ssub.s32 128, 128
      %392 = vsyncadd [#allocation3], %s391
      %s393 = sshll.u32 [#allocation2], 4
      %s394 = int_to_ptr.vmem [resolvable:$true] %s393
      %399 = dma.vmem_to_hbm [thread:$0]  %s394, 128, %s6, [#allocation3], 64, 64, 4
    $region33: #{sage_forward.6} parent=1 // pred_fallthru
      _
    // Predicated region
    $region34: #{sage_forward.6} parent=1 // pred_check
      _
    $region35: #{sage_forward.6} parent=1 // pred_check_branch
      %401 = sbr.rel (0) target = $region37
    $region36: #{sage_forward.6} parent=1 // pred_region
      _
    $region37: #{sage_forward.6} parent=1 // pred_fallthru
      _
    // Predicated region
    $region38: #{sage_forward.6} parent=1 // pred_check
      _
    $region39: #{sage_forward.6} parent=1 // pred_check_branch
      %403 = sbr.rel (0) target = $region41
    $region40: #{sage_forward.6} parent=1 // pred_region
      %404 = dma.done [#allocation3], 128
    $region41: #{sage_forward.6} parent=1 // pred_fallthru
      _
    // Predicated region
    $region42: #{sage_forward.6} parent=1 // pred_check
      _
    $region43: #{sage_forward.6} parent=1 // pred_check_branch
      %406 = sbr.rel (0) target = $region45
    $region44: #{sage_forward.6} parent=1 // pred_region
      _
    $region45: #{sage_forward.6} parent=1 // pred_fallthru
      _
    %407 = vsyncpa [#allocation3], 1

// kernel: sage_forward.7
$region0: #{sage_forward.7}
  #allocation0 [shape = 'u32[]', space=smem, size = 0x4, offset = 0x4, fixed_abs, tag = 'smem constant byte address 0x4 - core index']
  #allocation1 [shape = 'u32[144,128]{1,0:T(1,128)}', space=vmem, size = 0x12000, scoped, tag = 'internal scratch']
  %s0 = inlined_call_operand.vmem [shape: bf16[2,8,128], index: 0, kind: input, shape index: {}]
  %s1 = inlined_call_operand.vmem [shape: bf16[2,128,128], index: 1, kind: input, shape index: {}]
  %s2 = inlined_call_operand.vmem [shape: f32[2,1,128], index: 2, kind: input, shape index: {}]
  %s3 = inlined_call_operand.vmem [shape: bf16[2,128,128], index: 3, kind: input, shape index: {}]
  %s4 = inlined_call_operand.vmem [shape: f32[2,1,128], index: 4, kind: input, shape index: {}]
  %s5 = inlined_call_operand.vmem [shape: bf16[2,128,128], index: 5, kind: input, shape index: {}]
  %s6 = inlined_call_operand.vmem [shape: f32[2,1,128], index: 6, kind: input, shape index: {}]
  %s7 = inlined_call_operand.vmem [shape: f32[2,8,128], index: 7, kind: output, shape index: {}]
  %s8 = sld [smem:[#allocation0]]
  $region61: #{sage_forward.7} parent=0
    _
  %s10 = ssub.s32 1, %s8
  %s11 = scalar_select 0, %s10, %s8
  loop: start=0, step=1, limit=4
  $region2: #{sage_forward.7} parent=0 // loop_pre_header
    _
  $region3: #{sage_forward.7} parent=0 // loop_header
    %s13 = sphi 0, %s17
    %p14 = scmp.ge.s32.totalorder %s13, 4
    %s23 = sphi 0, %s25
    %s26 = sphi 0, %s23
    %s27 = sphi 0, %s26
    %s43 = sphi 0, %s27
    %s49 = sphi 0, %s51
    %s52 = sphi 0, %s49
    %s53 = sphi 0, %s52
    %s69 = sphi 0, %s53
    %s75 = sphi 0, %s77
    %s78 = sphi 0, %s75
    %s79 = sphi 0, %s78
    %s95 = sphi 0, %s79
    %s101 = sphi 0, %s103
    %s104 = sphi 0, %s101
    %s105 = sphi 0, %s104
    %s121 = sphi 0, %s105
    %s127 = sphi 0, %s129
    %s130 = sphi 0, %s127
    %s131 = sphi 0, %s130
    %s147 = sphi 0, %s131
    %s153 = sphi 0, %s155
    %s156 = sphi 0, %s153
    %s157 = sphi 0, %s156
    %s173 = sphi 0, %s157
    %s179 = sphi 0, %s181
    %s182 = sphi 0, %s179
    %s183 = sphi 0, %s182
    %s199 = sphi 0, %s183
    %s205 = sphi 0, %s207
    %s208 = sphi 0, %s205
    %s209 = sphi 0, %s208
    %s225 = sphi 0, %s209
  $region4: #{sage_forward.7} parent=0 // loop_header_branch
    %16 = sbr.rel (%p14) target = $region8
  $region5: #{sage_forward.7} parent=0 // loop_body
    %s18 = ssub.s32 %s13, 1
    %s19 = ssub.s32 %s13, 2
    %s20 = sadd.s32 %s13, 1
    %s21 = ssub.s32 %s13, %s20
    %p22 = scmp.eq.s32.totalorder %s21, 0
    %s24 = sadd.s32 %s23, 1
    %s25 = scalar_select %p22, %s23, %s24
    %p28 = pneg %p22
    %p29 = scmp.eq.s32.totalorder %s13, 1
    %p30 = por %p28, %p29
    %p31 = scmp.ne.s32.totalorder %s23, %s26
    %p32 = scmp.eq.s32.totalorder %s13, 0
    %p33 = por %p31, %p32
    %p34 = scmp.ne.s32.totalorder %s23, %s26
    %p35 = scmp.eq.s32.totalorder %s18, 1
    %p36 = por %p34, %p35
    %p37 = scmp.ne.s32.totalorder %s26, %s27
    %p38 = scmp.eq.s32.totalorder %s18, 0
    %p39 = por %p37, %p38
    %p40 = scmp.ne.s32.totalorder %s26, %s27
    %p41 = scmp.eq.s32.totalorder %s19, 1
    %p42 = por %p40, %p41
    %p44 = scmp.ne.s32.totalorder %s27, %s43
    %p45 = scmp.eq.s32.totalorder %s19, 0
    %p46 = por %p44, %p45
    %s47 = ssub.s32 %s13, %s20
    %p48 = scmp.eq.s32.totalorder %s47, 0
    %s50 = sadd.s32 %s49, 1
    %s51 = scalar_select %p48, %s49, %s50
    %p54 = pneg %p48
    %p55 = scmp.eq.s32.totalorder %s13, 1
    %p56 = por %p54, %p55
    %p57 = scmp.ne.s32.totalorder %s49, %s52
    %p58 = scmp.eq.s32.totalorder %s13, 0
    %p59 = por %p57, %p58
    %p60 = scmp.ne.s32.totalorder %s49, %s52
    %p61 = scmp.eq.s32.totalorder %s18, 1
    %p62 = por %p60, %p61
    %p63 = scmp.ne.s32.totalorder %s52, %s53
    %p64 = scmp.eq.s32.totalorder %s18, 0
    %p65 = por %p63, %p64
    %p66 = scmp.ne.s32.totalorder %s52, %s53
    %p67 = scmp.eq.s32.totalorder %s19, 1
    %p68 = por %p66, %p67
    %p70 = scmp.ne.s32.totalorder %s53, %s69
    %p71 = scmp.eq.s32.totalorder %s19, 0
    %p72 = por %p70, %p71
    %s73 = ssub.s32 %s13, %s20
    %p74 = scmp.eq.s32.totalorder %s73, 0
    %s76 = sadd.s32 %s75, 1
    %s77 = scalar_select %p74, %s75, %s76
    %p80 = pneg %p74
    %p81 = scmp.eq.s32.totalorder %s13, 1
    %p82 = por %p80, %p81
    %p83 = scmp.ne.s32.totalorder %s75, %s78
    %p84 = scmp.eq.s32.totalorder %s13, 0
    %p85 = por %p83, %p84
    %p86 = scmp.ne.s32.totalorder %s75, %s78
    %p87 = scmp.eq.s32.totalorder %s18, 1
    %p88 = por %p86, %p87
    %p89 = scmp.ne.s32.totalorder %s78, %s79
    %p90 = scmp.eq.s32.totalorder %s18, 0
    %p91 = por %p89, %p90
    %p92 = scmp.ne.s32.totalorder %s78, %s79
    %p93 = scmp.eq.s32.totalorder %s19, 1
    %p94 = por %p92, %p93
    %p96 = scmp.ne.s32.totalorder %s79, %s95
    %p97 = scmp.eq.s32.totalorder %s19, 0
    %p98 = por %p96, %p97
    %s99 = ssub.s32 %s13, %s20
    %p100 = scmp.eq.s32.totalorder %s99, 0
    %s102 = sadd.s32 %s101, 1
    %s103 = scalar_select %p100, %s101, %s102
    %p106 = pneg %p100
    %p107 = scmp.eq.s32.totalorder %s13, 1
    %p108 = por %p106, %p107
    %p109 = scmp.ne.s32.totalorder %s101, %s104
    %p110 = scmp.eq.s32.totalorder %s13, 0
    %p111 = por %p109, %p110
    %p112 = scmp.ne.s32.totalorder %s101, %s104
    %p113 = scmp.eq.s32.totalorder %s18, 1
    %p114 = por %p112, %p113
    %p115 = scmp.ne.s32.totalorder %s104, %s105
    %p116 = scmp.eq.s32.totalorder %s18, 0
    %p117 = por %p115, %p116
    %p118 = scmp.ne.s32.totalorder %s104, %s105
    %p119 = scmp.eq.s32.totalorder %s19, 1
    %p120 = por %p118, %p119
    %p122 = scmp.ne.s32.totalorder %s105, %s121
    %p123 = scmp.eq.s32.totalorder %s19, 0
    %p124 = por %p122, %p123
    %s125 = ssub.s32 %s13, %s20
    %p126 = scmp.eq.s32.totalorder %s125, 0
    %s128 = sadd.s32 %s127, 1
    %s129 = scalar_select %p126, %s127, %s128
    %p132 = pneg %p126
    %p133 = scmp.eq.s32.totalorder %s13, 1
    %p134 = por %p132, %p133
    %p135 = scmp.ne.s32.totalorder %s127, %s130
    %p136 = scmp.eq.s32.totalorder %s13, 0
    %p137 = por %p135, %p136
    %p138 = scmp.ne.s32.totalorder %s127, %s130
    %p139 = scmp.eq.s32.totalorder %s18, 1
    %p140 = por %p138, %p139
    %p141 = scmp.ne.s32.totalorder %s130, %s131
    %p142 = scmp.eq.s32.totalorder %s18, 0
    %p143 = por %p141, %p142
    %p144 = scmp.ne.s32.totalorder %s130, %s131
    %p145 = scmp.eq.s32.totalorder %s19, 1
    %p146 = por %p144, %p145
    %p148 = scmp.ne.s32.totalorder %s131, %s147
    %p149 = scmp.eq.s32.totalorder %s19, 0
    %p150 = por %p148, %p149
    %s151 = ssub.s32 %s13, %s20
    %p152 = scmp.eq.s32.totalorder %s151, 0
    %s154 = sadd.s32 %s153, 1
    %s155 = scalar_select %p152, %s153, %s154
    %p158 = pneg %p152
    %p159 = scmp.eq.s32.totalorder %s13, 1
    %p160 = por %p158, %p159
    %p161 = scmp.ne.s32.totalorder %s153, %s156
    %p162 = scmp.eq.s32.totalorder %s13, 0
    %p163 = por %p161, %p162
    %p164 = scmp.ne.s32.totalorder %s153, %s156
    %p165 = scmp.eq.s32.totalorder %s18, 1
    %p166 = por %p164, %p165
    %p167 = scmp.ne.s32.totalorder %s156, %s157
    %p168 = scmp.eq.s32.totalorder %s18, 0
    %p169 = por %p167, %p168
    %p170 = scmp.ne.s32.totalorder %s156, %s157
    %p171 = scmp.eq.s32.totalorder %s19, 1
    %p172 = por %p170, %p171
    %p174 = scmp.ne.s32.totalorder %s157, %s173
    %p175 = scmp.eq.s32.totalorder %s19, 0
    %p176 = por %p174, %p175
    %s177 = ssub.s32 %s13, %s20
    %p178 = scmp.eq.s32.totalorder %s177, 0
    %s180 = sadd.s32 %s179, 1
    %s181 = scalar_select %p178, %s179, %s180
    %p184 = pneg %p178
    %p185 = scmp.eq.s32.totalorder %s13, 1
    %p186 = por %p184, %p185
    %p187 = scmp.ne.s32.totalorder %s179, %s182
    %p188 = scmp.eq.s32.totalorder %s13, 0
    %p189 = por %p187, %p188
    %p190 = scmp.ne.s32.totalorder %s179, %s182
    %p191 = scmp.eq.s32.totalorder %s18, 1
    %p192 = por %p190, %p191
    %p193 = scmp.ne.s32.totalorder %s182, %s183
    %p194 = scmp.eq.s32.totalorder %s18, 0
    %p195 = por %p193, %p194
    %p196 = scmp.ne.s32.totalorder %s182, %s183
    %p197 = scmp.eq.s32.totalorder %s19, 1
    %p198 = por %p196, %p197
    %p200 = scmp.ne.s32.totalorder %s183, %s199
    %p201 = scmp.eq.s32.totalorder %s19, 0
    %p202 = por %p200, %p201
    %s203 = ssub.s32 %s13, %s20
    %p204 = scmp.eq.s32.totalorder %s203, 0
    %s206 = sadd.s32 %s205, 1
    %s207 = scalar_select %p204, %s205, %s206
    %p210 = pneg %p204
    %p211 = scmp.eq.s32.totalorder %s13, 1
    %p212 = por %p210, %p211
    %p213 = scmp.ne.s32.totalorder %s205, %s208
    %p214 = scmp.eq.s32.totalorder %s13, 0
    %p215 = por %p213, %p214
    %p216 = scmp.ne.s32.totalorder %s205, %s208
    %p217 = scmp.eq.s32.totalorder %s18, 1
    %p218 = por %p216, %p217
    %p219 = scmp.ne.s32.totalorder %s208, %s209
    %p220 = scmp.eq.s32.totalorder %s18, 0
    %p221 = por %p219, %p220
    %p222 = scmp.ne.s32.totalorder %s208, %s209
    %p223 = scmp.eq.s32.totalorder %s19, 1
    %p224 = por %p222, %p223
    %p226 = scmp.ne.s32.totalorder %s209, %s225
    %p227 = scmp.eq.s32.totalorder %s19, 0
    %p228 = por %p226, %p227
    %p229 = scmp.le.s32.totalorder 1, %s13
    %p230 = scmp.lt.s32.totalorder %s13, 3
    %p231 = pnand %p229, %p230
    %p232 = pneg %p231
    // Predicated region
    $region9: #{sage_forward.7} parent=5 // pred_check
      _
    $region10: #{sage_forward.7} parent=5 // pred_check_branch
      %234 = sbr.rel (%p231) target = $region12
    $region11: #{sage_forward.7} parent=5 // pred_region
      %s235 = ssub.s32 %s13, 1
    $region12: #{sage_forward.7} parent=5 // pred_fallthru
      _
    %p236 = scmp.lt.s32.totalorder %s13, 2
    // Predicated region
    $region13: #{sage_forward.7} parent=5 // pred_check
      %p237 = pneg %p236
    $region14: #{sage_forward.7} parent=5 // pred_check_branch
      %239 = sbr.rel (%p237) target = $region16
    $region15: #{sage_forward.7} parent=5 // pred_region
      // Predicated region
      $region17: #{sage_forward.7} parent=15 // pred_check
        %p240 = pneg %p33
      $region18: #{sage_forward.7} parent=15 // pred_check_branch
        %242 = sbr.rel (%p240) target = $region20
      $region19: #{sage_forward.7} parent=15 // pred_region
        %p243 = scmp.lt.s32.totalorder %s13, 1
        %s244 = scalar_select %p243, %s13, 1
        %s245 = smul.addr %s244, 4
        %s246 = scalar_lea.vmem %s0, %s245
      $region20: #{sage_forward.7} parent=15 // pred_fallthru
        _
      // Predicated region
      $region21: #{sage_forward.7} parent=15 // pred_check
        %p247 = pneg %p59
      $region22: #{sage_forward.7} parent=15 // pred_check_branch
        %249 = sbr.rel (%p247) target = $region24
      $region23: #{sage_forward.7} parent=15 // pred_region
        %p250 = scmp.lt.s32.totalorder %s13, 1
        %s251 = scalar_select %p250, %s13, 1
        %s252 = smul.addr %s251, 16
        %s253 = smul.addr %s252, 4
        %s254 = scalar_lea.vmem %s1, %s253
      $region24: #{sage_forward.7} parent=15 // pred_fallthru
        _
      // Predicated region
      $region25: #{sage_forward.7} parent=15 // pred_check
        %p255 = pneg %p85
      $region26: #{sage_forward.7} parent=15 // pred_check_branch
        %257 = sbr.rel (%p255) target = $region28
      $region27: #{sage_forward.7} parent=15 // pred_region
        %p258 = scmp.lt.s32.totalorder %s13, 1
        %s259 = scalar_select %p258, %s13, 1
        %s260 = scalar_lea.vmem %s2, %s259
      $region28: #{sage_forward.7} parent=15 // pred_fallthru
        _
      // Predicated region
      $region29: #{sage_forward.7} parent=15 // pred_check
        %p261 = pneg %p111
      $region30: #{sage_forward.7} parent=15 // pred_check_branch
        %263 = sbr.rel (%p261) target = $region32
      $region31: #{sage_forward.7} parent=15 // pred_region
        %p264 = scmp.lt.s32.totalorder %s13, 1
        %s265 = scalar_select %p264, %s13, 1
        %s266 = smul.addr %s265, 16
        %s267 = smul.addr %s266, 4
        %s268 = scalar_lea.vmem %s3, %s267
      $region32: #{sage_forward.7} parent=15 // pred_fallthru
        _
      // Predicated region
      $region33: #{sage_forward.7} parent=15 // pred_check
        %p269 = pneg %p137
      $region34: #{sage_forward.7} parent=15 // pred_check_branch
        %271 = sbr.rel (%p269) target = $region36
      $region35: #{sage_forward.7} parent=15 // pred_region
        %p272 = scmp.lt.s32.totalorder %s13, 1
        %s273 = scalar_select %p272, %s13, 1
        %s274 = scalar_lea.vmem %s4, %s273
      $region36: #{sage_forward.7} parent=15 // pred_fallthru
        _
      // Predicated region
      $region37: #{sage_forward.7} parent=15 // pred_check
        %p275 = pneg %p163
      $region38: #{sage_forward.7} parent=15 // pred_check_branch
        %277 = sbr.rel (%p275) target = $region40
      $region39: #{sage_forward.7} parent=15 // pred_region
        %p278 = scmp.lt.s32.totalorder %s13, 1
        %s279 = scalar_select %p278, %s13, 1
        %s280 = smul.addr %s279, 16
        %s281 = smul.addr %s280, 4
        %s282 = scalar_lea.vmem %s5, %s281
      $region40: #{sage_forward.7} parent=15 // pred_fallthru
        _
      // Predicated region
      $region41: #{sage_forward.7} parent=15 // pred_check
        %p283 = pneg %p189
      $region42: #{sage_forward.7} parent=15 // pred_check_branch
        %285 = sbr.rel (%p283) target = $region44
      $region43: #{sage_forward.7} parent=15 // pred_region
        %p286 = scmp.lt.s32.totalorder %s13, 1
        %s287 = scalar_select %p286, %s13, 1
        %s288 = scalar_lea.vmem %s6, %s287
      $region44: #{sage_forward.7} parent=15 // pred_fallthru
        _
    $region16: #{sage_forward.7} parent=5 // pred_fallthru
      _
    %p289 = scmp.le.s32.totalorder 1, %s13
    %p290 = scmp.lt.s32.totalorder %s13, 3
    %p291 = pnand %p289, %p290
    %p292 = pneg %p291
    // Predicated region
    $region45: #{sage_forward.7} parent=5 // pred_check
      _
    $region46: #{sage_forward.7} parent=5 // pred_check_branch
      %294 = sbr.rel (%p291) target = $region48
    $region47: #{sage_forward.7} parent=5 // pred_region
      %s295 = ssub.s32 %s13, 1
      %p296 = scmp.lt.s32.totalorder %s18, 1
      %s297 = scalar_select %p296, %s18, 1
      %s298 = smul.addr %s297, 4
      %s299 = scalar_lea.vmem %s0, %s298
      %p300 = pneg %p39
      %p301 = pneg %p36
      %p302 = scmp.lt.s32.totalorder %s18, 1
      %s303 = scalar_select %p302, %s18, 1
      %s304 = smul.addr %s303, 16
      %s305 = smul.addr %s304, 4
      %s306 = scalar_lea.vmem %s1, %s305
      %p307 = pneg %p65
      %p308 = pneg %p62
      %p309 = scmp.lt.s32.totalorder %s18, 1
      %s310 = scalar_select %p309, %s18, 1
      %s311 = scalar_lea.vmem %s2, %s310
      %p312 = pneg %p91
      %p313 = pneg %p88
      %p314 = scmp.lt.s32.totalorder %s18, 1
      %s315 = scalar_select %p314, %s18, 1
      %s316 = smul.addr %s315, 16
      %s317 = smul.addr %s316, 4
      %s318 = scalar_lea.vmem %s3, %s317
      %p319 = pneg %p117
      %p320 = pneg %p114
      %p321 = scmp.lt.s32.totalorder %s18, 1
      %s322 = scalar_select %p321, %s18, 1
      %s323 = scalar_lea.vmem %s4, %s322
      %p324 = pneg %p143
      %p325 = pneg %p140
      %p326 = scmp.lt.s32.totalorder %s18, 1
      %s327 = scalar_select %p326, %s18, 1
      %s328 = smul.addr %s327, 16
      %s329 = smul.addr %s328, 4
      %s330 = scalar_lea.vmem %s5, %s329
      %p331 = pneg %p169
      %p332 = pneg %p166
      %p333 = scmp.lt.s32.totalorder %s18, 1
      %s334 = scalar_select %p333, %s18, 1
      %s335 = scalar_lea.vmem %s6, %s334
      %p336 = pneg %p195
      %p337 = pneg %p192
      %p338 = pneg %p221
      %p339 = pneg %p218
      %p340 = scmp.lt.s32.totalorder %s18, 1
      %s341 = scalar_select %p340, %s18, 1
      %s342 = smul.addr %s341, 8
      %s343 = scalar_lea.vmem %s7, %s342
      %p344 = scmp.lt.s32.totalorder %s18, 1
      %s345 = scalar_select %p344, %s18, 1
      %s346 = smul.addr %s345, 4
      %s347 = scalar_lea.vmem %s0, %s346
      %p348 = scmp.lt.s32.totalorder %s18, 1
      %s349 = scalar_select %p348, %s18, 1
      %s350 = smul.addr %s349, 16
      %s351 = smul.addr %s350, 4
      %s352 = scalar_lea.vmem %s1, %s351
      %p353 = scmp.lt.s32.totalorder %s18, 1
      %s354 = scalar_select %p353, %s18, 1
      %s355 = scalar_lea.vmem %s2, %s354
      %p356 = scmp.lt.s32.totalorder %s18, 1
      %s357 = scalar_select %p356, %s18, 1
      %s358 = smul.addr %s357, 16
      %s359 = smul.addr %s358, 4
      %s360 = scalar_lea.vmem %s3, %s359
      %p361 = scmp.lt.s32.totalorder %s18, 1
      %s362 = scalar_select %p361, %s18, 1
      %s363 = scalar_lea.vmem %s4, %s362
      %p364 = scmp.lt.s32.totalorder %s18, 1
      %s365 = scalar_select %p364, %s18, 1
      %s366 = smul.addr %s365, 16
      %s367 = smul.addr %s366, 4
      %s368 = scalar_lea.vmem %s5, %s367
      %p369 = scmp.lt.s32.totalorder %s18, 1
      %s370 = scalar_select %p369, %s18, 1
      %s371 = scalar_lea.vmem %s6, %s370
      %p372 = scmp.lt.s32.totalorder %s18, 1
      %s373 = scalar_select %p372, %s18, 1
      %s374 = smul.addr %s373, 8
      %s375 = scalar_lea.vmem %s7, %s374
      %v377 = vld [vmem:[%s347] sm:$0xf]
      %v378 = vld [vmem:[%s352] sm:$0xf]
      %v379 = vld [vmem:[%s352 + $0x4] sm:$0xf]
      %v380 = vld [vmem:[%s352 + $0x8] sm:$0xf]
      %v381 = vld [vmem:[%s352 + $0xc] sm:$0xf]
      %v382 = vld [vmem:[%s352 + $0x10] sm:$0xf]
      %v383 = vld [vmem:[%s352 + $0x14] sm:$0xf]
      %v384 = vld [vmem:[%s352 + $0x18] sm:$0xf]
      %v385 = vld [vmem:[%s352 + $0x1c] sm:$0xf]
      %v386 = vld [vmem:[%s352 + $0x20] sm:$0xf]
      %v387 = vld [vmem:[%s352 + $0x24] sm:$0xf]
      %v388 = vld [vmem:[%s352 + $0x28] sm:$0xf]
      %v389 = vld [vmem:[%s352 + $0x2c] sm:$0xf]
      %v390 = vld [vmem:[%s352 + $0x30] sm:$0xf]
      %v391 = vld [vmem:[%s352 + $0x34] sm:$0xf]
      %v392 = vld [vmem:[%s352 + $0x38] sm:$0xf]
      %v393 = vld [vmem:[%s352 + $0x3c] sm:$0xf]
      %v394 = vld [vmem:[%s355] sm:$0x1]
      %v396 = vlaneseq
      %v397 = vshrl.u32 %v396, 7
      %v398 = vsub.s32 0, %v397
      %v399 = vrot.slane %v394, %v398
      %v417 = vunpack.c.l.b16 %v378
      %v418 = vunpack.c.l.b16 %v379
      %v419 = vunpack.c.l.b16 %v380
      %v420 = vunpack.c.l.b16 %v381
      %v421 = vunpack.c.l.b16 %v382
      %v422 = vunpack.c.l.b16 %v383
      %v423 = vunpack.c.l.b16 %v384
      %v424 = vunpack.c.l.b16 %v385
      %v425 = vunpack.c.l.b16 %v386
      %v426 = vunpack.c.l.b16 %v387
      %v427 = vunpack.c.l.b16 %v388
      %v428 = vunpack.c.l.b16 %v389
      %v429 = vunpack.c.l.b16 %v390
      %v430 = vunpack.c.l.b16 %v391
      %v431 = vunpack.c.l.b16 %v392
      %v432 = vunpack.c.l.b16 %v393
      %v433 = vpack.c.b16 %v418, %v417
      %v434 = vpack.c.b16 %v420, %v419
      %v435 = vpack.c.b16 %v422, %v421
      %v436 = vpack.c.b16 %v424, %v423
      %v437 = vpack.c.b16 %v426, %v425
      %v438 = vpack.c.b16 %v428, %v427
      %v439 = vpack.c.b16 %v430, %v429
      %v440 = vpack.c.b16 %v432, %v431
      %449 = vmatprep.subr.bf16.mxu0 0
      %450 = vmatpush1.bf16.msra.mxu0 %v440
      %451 = vmatprep.subr.bf16.mxu0 0
      %452 = vmatpush1.bf16.msra.mxu0 %v439
      %453 = vmatprep.subr.bf16.mxu0 0
      %454 = vmatpush1.bf16.msra.mxu0 %v438
      %455 = vmatprep.subr.bf16.mxu0 0
      %456 = vmatpush1.bf16.msra.mxu0 %v437
      %457 = vmatprep.subr.bf16.mxu0 0
      %458 = vmatpush1.bf16.msra.mxu0 %v436
      %459 = vmatprep.subr.bf16.mxu0 0
      %460 = vmatpush1.bf16.msra.mxu0 %v435
      %461 = vmatprep.subr.bf16.mxu0 0
      %462 = vmatpush1.bf16.msra.mxu0 %v434
      %463 = vmatprep.subr.bf16.mxu0 0
      %464 = vmatpush1.bf16.msra.mxu0 %v433
      %465 = vmatprep.subr.bf16.mxu0 0
      %466 = vmatpush2.bf16.msra.mxu0 0
      %467 = vmatprep.subr.bf16.mxu0 0
      %468 = vmatpush2.bf16.msra.mxu0 0
      %469 = vmatprep.subr.bf16.mxu0 0
      %470 = vmatpush2.bf16.msra.mxu0 0
      %471 = vmatprep.subr.bf16.mxu0 0
      %472 = vmatpush2.bf16.msra.mxu0 0
      %473 = vmatprep.subr.bf16.mxu0 0
      %474 = vmatpush2.bf16.msra.mxu0 0
      %475 = vmatprep.subr.bf16.mxu0 0
      %476 = vmatpush2.bf16.msra.mxu0 0
      %477 = vmatprep.subr.bf16.mxu0 0
      %478 = vmatpush2.bf16.msra.mxu0 0
      %479 = vmatprep.subr.bf16.mxu0 0
      %480 = vmatpush2.bf16.msra.mxu0 0
      %481 = vmatprep.mubr.bf16.mxu0 0
      %482 = vmatmul.mubr.bf16.gmra.mxu0 %v377
      %v483 = vpop.f32.mrf.mxu0
      %v484 = vadd.f32 %v399, %v483
      %v485 = vpop.f32.mrf.mxu0
      %v486 = vpop.f32.mrf.mxu0
      %v487 = vpop.f32.mrf.mxu0
      %488 = vdwg.mxu0
      %v489 = vmax.f32 %v484, 0.0
      %v490 = vpack.c.bf16 %v489, %v489
      %v491 = vld [vmem:[%s360] sm:$0xf]
      %v492 = vld [vmem:[%s360 + $0x4] sm:$0xf]
      %v493 = vld [vmem:[%s360 + $0x8] sm:$0xf]
      %v494 = vld [vmem:[%s360 + $0xc] sm:$0xf]
      %v495 = vld [vmem:[%s360 + $0x10] sm:$0xf]
      %v496 = vld [vmem:[%s360 + $0x14] sm:$0xf]
      %v497 = vld [vmem:[%s360 + $0x18] sm:$0xf]
      %v498 = vld [vmem:[%s360 + $0x1c] sm:$0xf]
      %v499 = vld [vmem:[%s360 + $0x20] sm:$0xf]
      %v500 = vld [vmem:[%s360 + $0x24] sm:$0xf]
      %v501 = vld [vmem:[%s360 + $0x28] sm:$0xf]
      %v502 = vld [vmem:[%s360 + $0x2c] sm:$0xf]
      %v503 = vld [vmem:[%s360 + $0x30] sm:$0xf]
      %v504 = vld [vmem:[%s360 + $0x34] sm:$0xf]
      %v505 = vld [vmem:[%s360 + $0x38] sm:$0xf]
      %v506 = vld [vmem:[%s360 + $0x3c] sm:$0xf]
      %v507 = vld [vmem:[%s363] sm:$0x1]
      %v509 = vlaneseq
      %v510 = vshrl.u32 %v509, 7
      %v511 = vsub.s32 0, %v510
      %v512 = vrot.slane %v507, %v511
      %v530 = vunpack.c.l.b16 %v491
      %v531 = vunpack.c.l.b16 %v492
      %v532 = vunpack.c.l.b16 %v493
      %v533 = vunpack.c.l.b16 %v494
      %v534 = vunpack.c.l.b16 %v495
      %v535 = vunpack.c.l.b16 %v496
      %v536 = vunpack.c.l.b16 %v497
      %v537 = vunpack.c.l.b16 %v498
      %v538 = vunpack.c.l.b16 %v499
      %v539 = vunpack.c.l.b16 %v500
      %v540 = vunpack.c.l.b16 %v501
      %v541 = vunpack.c.l.b16 %v502
      %v542 = vunpack.c.l.b16 %v503
      %v543 = vunpack.c.l.b16 %v504
      %v544 = vunpack.c.l.b16 %v505
      %v545 = vunpack.c.l.b16 %v506
      %v546 = vpack.c.b16 %v531, %v530
      %v547 = vpack.c.b16 %v533, %v532
      %v548 = vpack.c.b16 %v535, %v534
      %v549 = vpack.c.b16 %v537, %v536
      %v550 = vpack.c.b16 %v539, %v538
      %v551 = vpack.c.b16 %v541, %v540
      %v552 = vpack.c.b16 %v543, %v542
      %v553 = vpack.c.b16 %v545, %v544
      %562 = vmatprep.subr.bf16.mxu0 0
      %563 = vmatpush1.bf16.msra.mxu0 %v553
      %564 = vmatprep.subr.bf16.mxu0 0
      %565 = vmatpush1.bf16.msra.mxu0 %v552
      %566 = vmatprep.subr.bf16.mxu0 0
      %567 = vmatpush1.bf16.msra.mxu0 %v551
      %568 = vmatprep.subr.bf16.mxu0 0
      %569 = vmatpush1.bf16.msra.mxu0 %v550
      %570 = vmatprep.subr.bf16.mxu0 0
      %571 = vmatpush1.bf16.msra.mxu0 %v549
      %572 = vmatprep.subr.bf16.mxu0 0
      %573 = vmatpush1.bf16.msra.mxu0 %v548
      %574 = vmatprep.subr.bf16.mxu0 0
      %575 = vmatpush1.bf16.msra.mxu0 %v547
      %576 = vmatprep.subr.bf16.mxu0 0
      %577 = vmatpush1.bf16.msra.mxu0 %v546
      %578 = vmatprep.subr.bf16.mxu0 0
      %579 = vmatpush2.bf16.msra.mxu0 0
      %580 = vmatprep.subr.bf16.mxu0 0
      %581 = vmatpush2.bf16.msra.mxu0 0
      %582 = vmatprep.subr.bf16.mxu0 0
      %583 = vmatpush2.bf16.msra.mxu0 0
      %584 = vmatprep.subr.bf16.mxu0 0
      %585 = vmatpush2.bf16.msra.mxu0 0
      %586 = vmatprep.subr.bf16.mxu0 0
      %587 = vmatpush2.bf16.msra.mxu0 0
      %588 = vmatprep.subr.bf16.mxu0 0
      %589 = vmatpush2.bf16.msra.mxu0 0
      %590 = vmatprep.subr.bf16.mxu0 0
      %591 = vmatpush2.bf16.msra.mxu0 0
      %592 = vmatprep.subr.bf16.mxu0 0
      %593 = vmatpush2.bf16.msra.mxu0 0
      %594 = vmatprep.mubr.bf16.mxu0 0
      %595 = vmatmul.mubr.bf16.gmra.mxu0 %v490
      %v596 = vpop.f32.mrf.mxu0
      %v597 = vadd.f32 %v512, %v596
      %v598 = vpop.f32.mrf.mxu0
      %v599 = vpop.f32.mrf.mxu0
      %v600 = vpop.f32.mrf.mxu0
      %601 = vdwg.mxu0
      %v602 = vmax.f32 %v597, 0.0
      %v603 = vpack.c.bf16 %v602, %v602
      %v604 = vld [vmem:[%s368] sm:$0xf]
      %v605 = vld [vmem:[%s368 + $0x4] sm:$0xf]
      %v606 = vld [vmem:[%s368 + $0x8] sm:$0xf]
      %v607 = vld [vmem:[%s368 + $0xc] sm:$0xf]
      %v608 = vld [vmem:[%s368 + $0x10] sm:$0xf]
      %v609 = vld [vmem:[%s368 + $0x14] sm:$0xf]
      %v610 = vld [vmem:[%s368 + $0x18] sm:$0xf]
      %v611 = vld [vmem:[%s368 + $0x1c] sm:$0xf]
      %v612 = vld [vmem:[%s368 + $0x20] sm:$0xf]
      %v613 = vld [vmem:[%s368 + $0x24] sm:$0xf]
      %v614 = vld [vmem:[%s368 + $0x28] sm:$0xf]
      %v615 = vld [vmem:[%s368 + $0x2c] sm:$0xf]
      %v616 = vld [vmem:[%s368 + $0x30] sm:$0xf]
      %v617 = vld [vmem:[%s368 + $0x34] sm:$0xf]
      %v618 = vld [vmem:[%s368 + $0x38] sm:$0xf]
      %v619 = vld [vmem:[%s368 + $0x3c] sm:$0xf]
      %v620 = vld [vmem:[%s371] sm:$0x1]
      %v622 = vlaneseq
      %v623 = vshrl.u32 %v622, 7
      %v624 = vsub.s32 0, %v623
      %v625 = vrot.slane %v620, %v624
      %v643 = vunpack.c.l.b16 %v604
      %v644 = vunpack.c.l.b16 %v605
      %v645 = vunpack.c.l.b16 %v606
      %v646 = vunpack.c.l.b16 %v607
      %v647 = vunpack.c.l.b16 %v608
      %v648 = vunpack.c.l.b16 %v609
      %v649 = vunpack.c.l.b16 %v610
      %v650 = vunpack.c.l.b16 %v611
      %v651 = vunpack.c.l.b16 %v612
      %v652 = vunpack.c.l.b16 %v613
      %v653 = vunpack.c.l.b16 %v614
      %v654 = vunpack.c.l.b16 %v615
      %v655 = vunpack.c.l.b16 %v616
      %v656 = vunpack.c.l.b16 %v617
      %v657 = vunpack.c.l.b16 %v618
      %v658 = vunpack.c.l.b16 %v619
      %v659 = vpack.c.b16 %v644, %v643
      %v660 = vpack.c.b16 %v646, %v645
      %v661 = vpack.c.b16 %v648, %v647
      %v662 = vpack.c.b16 %v650, %v649
      %v663 = vpack.c.b16 %v652, %v651
      %v664 = vpack.c.b16 %v654, %v653
      %v665 = vpack.c.b16 %v656, %v655
      %v666 = vpack.c.b16 %v658, %v657
      %675 = vmatprep.subr.bf16.mxu0 0
      %676 = vmatpush1.bf16.msra.mxu0 %v666
      %677 = vmatprep.subr.bf16.mxu0 0
      %678 = vmatpush1.bf16.msra.mxu0 %v665
      %679 = vmatprep.subr.bf16.mxu0 0
      %680 = vmatpush1.bf16.msra.mxu0 %v664
      %681 = vmatprep.subr.bf16.mxu0 0
      %682 = vmatpush1.bf16.msra.mxu0 %v663
      %683 = vmatprep.subr.bf16.mxu0 0
      %684 = vmatpush1.bf16.msra.mxu0 %v662
      %685 = vmatprep.subr.bf16.mxu0 0
      %686 = vmatpush1.bf16.msra.mxu0 %v661
      %687 = vmatprep.subr.bf16.mxu0 0
      %688 = vmatpush1.bf16.msra.mxu0 %v660
      %689 = vmatprep.subr.bf16.mxu0 0
      %690 = vmatpush1.bf16.msra.mxu0 %v659
      %691 = vmatprep.subr.bf16.mxu0 0
      %692 = vmatpush2.bf16.msra.mxu0 0
      %693 = vmatprep.subr.bf16.mxu0 0
      %694 = vmatpush2.bf16.msra.mxu0 0
      %695 = vmatprep.subr.bf16.mxu0 0
      %696 = vmatpush2.bf16.msra.mxu0 0
      %697 = vmatprep.subr.bf16.mxu0 0
      %698 = vmatpush2.bf16.msra.mxu0 0
      %699 = vmatprep.subr.bf16.mxu0 0
      %700 = vmatpush2.bf16.msra.mxu0 0
      %701 = vmatprep.subr.bf16.mxu0 0
      %702 = vmatpush2.bf16.msra.mxu0 0
      %703 = vmatprep.subr.bf16.mxu0 0
      %704 = vmatpush2.bf16.msra.mxu0 0
      %705 = vmatprep.subr.bf16.mxu0 0
      %706 = vmatpush2.bf16.msra.mxu0 0
      %707 = vmatprep.mubr.bf16.mxu0 0
      %708 = vmatmul.mubr.bf16.gmra.mxu0 %v603
      %v709 = vpop.f32.mrf.mxu0
      %v710 = vadd.f32 %v625, %v709
      %v711 = vpop.f32.mrf.mxu0
      %v712 = vpop.f32.mrf.mxu0
      %v713 = vpop.f32.mrf.mxu0
      %714 = vdwg.mxu0
      %715 = vst [vmem:[%s375] sm:$0xff] %v710
      %p716 = scmp.lt.s32.totalorder %s18, 1
      %s717 = scalar_select %p716, %s18, 1
      %s718 = smul.addr %s717, 8
      %s719 = scalar_lea.vmem %s7, %s718
      // Predicated region
      $region49: #{sage_forward.7} parent=47 // pred_check
        %p720 = pneg %p218
      $region50: #{sage_forward.7} parent=47 // pred_check_branch
        %722 = sbr.rel (%p720) target = $region52
      $region51: #{sage_forward.7} parent=47 // pred_region
        _
      $region52: #{sage_forward.7} parent=47 // pred_fallthru
        _
    $region48: #{sage_forward.7} parent=5 // pred_fallthru
      _
    %p723 = scmp.le.s32.totalorder 2, %s13
    // Predicated region
    $region53: #{sage_forward.7} parent=5 // pred_check
      %p724 = pneg %p723
    $region54: #{sage_forward.7} parent=5 // pred_check_branch
      %726 = sbr.rel (%p724) target = $region56
    $region55: #{sage_forward.7} parent=5 // pred_region
      %s727 = ssub.s32 %s13, 2
      // Predicated region
      $region57: #{sage_forward.7} parent=55 // pred_check
        %p728 = pneg %p224
      $region58: #{sage_forward.7} parent=55 // pred_check_branch
        %730 = sbr.rel (%p728) target = $region60
      $region59: #{sage_forward.7} parent=55 // pred_region
        %p731 = scmp.lt.s32.totalorder %s19, 1
        %s732 = scalar_select %p731, %s19, 1
        %s733 = smul.addr %s732, 8
        %s734 = scalar_lea.vmem %s7, %s733
      $region60: #{sage_forward.7} parent=55 // pred_fallthru
        _
    $region56: #{sage_forward.7} parent=5 // pred_fallthru
      _
  $region6: #{sage_forward.7} parent=0 // loop_footer
    %s17 = sadd.s32 1, %s13
  $region7: #{sage_forward.7} parent=0 // loop_footer_branch
    %12 = sbr.rel target = $region3
  $region8: #{sage_forward.7} parent=0 // loop_exit
    _

</llo_original>
